<compile_context>
chip_gen: v6e
topology: v6e:2x2x1
jax: 0.10.0
libtpu: 0.0.40
codegen_flags: <defaults>
</compile_context>

<pallas_src>
import functools

import jax
import jax.numpy as jnp
import numpy as np
from jax.experimental import pallas as pl
from jax.experimental.pallas import tpu as pltpu

_EPS = 1e-5  # torch.nn.InstanceNorm2d default (affine=False, no running stats)


def _resblock_kernel(xp_ref, w1_ref, b1_ref, w2_ref, b2_ref, o_ref, h1p_ref,
                     *, C, H, W):
    """One grid step == one sample.

    xp_ref : (1, C, HWP) flat zero-padded input, HWP = H*W + 2*(W+1)
    w*_ref : (9, C, C)   tap-major weights, w[3*(dy+1)+(dx+1)] = W[:, :, dy+1, dx+1]
    b*_ref : (C, 1)      biases
    o_ref  : (1, C, H*W) output
    h1p_ref: (C, HWP)    VMEM scratch for the flat-padded intermediate
    """
    HW = H * W
    PAD = W + 1
    HWP = HW + 2 * PAD

    # Column index (w) of every flattened spatial position; used to mask the
    # x-direction wrap-around of the flat-shift trick.  Built once, reused by
    # both convs (float masks -> plain broadcast multiplies).
    col = jax.lax.broadcasted_iota(jnp.int32, (1, HW), 1) % W
    mask_left = (col >= 1).astype(jnp.float32)        # valid when dx == -1
    mask_right = (col <= W - 2).astype(jnp.float32)   # valid when dx == +1

    def conv3x3(load_patch, w_ref, b_ref):
        # out[o, p] = b[o] + sum_{dy,dx,c} w[o,c,dy,dx] * src[c, p + dy*W + dx]
        acc = jnp.zeros((C, HW), jnp.float32)
        for dy in (-1, 0, 1):
            for dx in (-1, 0, 1):
                k = 3 * (dy + 1) + (dx + 1)
                patch = load_patch(PAD + dy * W + dx)          # (C, HW) f32
                if dx == -1:
                    patch = patch * mask_left
                elif dx == 1:
                    patch = patch * mask_right
                acc = acc + jnp.dot(w_ref[k], patch,
                                    preferred_element_type=jnp.float32)
        return acc + b_ref[...]                                # (C, 1) broadcast

    def instance_norm(v):
        mu = jnp.mean(v, axis=-1, keepdims=True)
        cen = v - mu
        var = jnp.mean(cen * cen, axis=-1, keepdims=True)
        return cen * jax.lax.rsqrt(var + _EPS)

    # --- conv1 + InstanceNorm + ReLU ---------------------------------------
    h1 = conv3x3(lambda off: xp_ref[0, :, off:off + HW].astype(jnp.float32),
                 w1_ref, b1_ref)
    h1 = jnp.maximum(instance_norm(h1), 0.0)

    # Stage the flat zero-padded intermediate in VMEM scratch so conv2 reuses
    # the same static-slice formulation.
    h1p_ref[...] = jnp.zeros((C, HWP), jnp.float32)
    h1p_ref[:, PAD:PAD + HW] = h1

    # --- conv2 + InstanceNorm + residual add -------------------------------
    h2 = conv3x3(lambda off: h1p_ref[:, off:off + HW], w2_ref, b2_ref)
    h2 = instance_norm(h2)

    residual = xp_ref[0, :, PAD:PAD + HW].astype(jnp.float32)
    o_ref[0] = (h2 + residual).astype(o_ref.dtype)


def _round_up(n, m):
    return ((n + m - 1) // m) * m


def resblock_forward(x, w1, b1, w2, b2):
    """Pallas forward of ResBlock(channels, norm='in', act='relu', pad_type='zero')."""
    B, C, H, W = x.shape
    HW = H * W
    PAD = W + 1
    HWP = HW + 2 * PAD

    # Pad channels to a sublane-friendly multiple of 8.  The extra channels are
    # identically zero through conv / instance-norm / residual, and are sliced
    # off at the end.
    CP = max(8, _round_up(C, 8))

    def pad_c(a, axes):
        pads = [(0, 0)] * a.ndim
        for ax in axes:
            pads[ax] = (0, CP - C)
        return jnp.pad(a, pads)

    xf = pad_c(x.astype(jnp.float32), (1,)).reshape(B, CP, HW)
    xp = jnp.pad(xf, ((0, 0), (0, 0), (PAD, PAD)))       # flat zero pad on lanes

    def prep_w(w):
        wp = pad_c(w.astype(jnp.float32), (0, 1))        # (CP, CP, 3, 3)
        return jnp.transpose(wp, (2, 3, 0, 1)).reshape(9, CP, CP)

    w1r, w2r = prep_w(w1), prep_w(w2)
    b1r = pad_c(b1.astype(jnp.float32), (0,)).reshape(CP, 1)
    b2r = pad_c(b2.astype(jnp.float32), (0,)).reshape(CP, 1)

    kernel = functools.partial(_resblock_kernel, C=CP, H=H, W=W)

    out = pl.pallas_call(
        kernel,
        out_shape=jax.ShapeDtypeStruct((B, CP, HW), x.dtype),
        grid_spec=pltpu.PrefetchScalarGridSpec(
            num_scalar_prefetch=0,
            grid=(B,),
            in_specs=[
                pl.BlockSpec((1, CP, HWP), lambda b: (b, 0, 0)),   # padded x
                pl.BlockSpec((9, CP, CP), lambda b: (0, 0, 0)),    # w1 taps
                pl.BlockSpec((CP, 1), lambda b: (0, 0)),           # b1
                pl.BlockSpec((9, CP, CP), lambda b: (0, 0, 0)),    # w2 taps
                pl.BlockSpec((CP, 1), lambda b: (0, 0)),           # b2
            ],
            out_specs=pl.BlockSpec((1, CP, HW), lambda b: (b, 0, 0)),
            scratch_shapes=[pltpu.VMEM((CP, HWP), jnp.float32)],
        ),
        compiler_params=pltpu.CompilerParams(
            dimension_semantics=("parallel",),
        ),
    )(xp, w1r, b1r, w2r, b2r)

    return out[:, :C, :].reshape(B, C, H, W)


class ResBlock:
    """Mirror of PyTorch ResBlock(channels, norm='in', act='relu', pad_type='zero')."""

    def __init__(self, channels, norm='in', act='relu', pad_type='zero', *, key=None):
        assert norm == 'in' and act == 'relu' and pad_type == 'zero', \
            "only the default ResBlock configuration is implemented"
        # TODO(synk): other ConvNormAct variants (bn/ln/adain/sn norms, lrelu/prelu/
        # selu/tanh acts, reflect/replicate padding, dropout) are not ported.
        self.channels = channels
        if key is None:
            key = jax.random.PRNGKey(0)
        k1, k2, k3, k4 = jax.random.split(key, 4)
        bound = 1.0 / np.sqrt(channels * 9)   # ~ torch Conv2d default init bound
        self.w1 = jax.random.uniform(k1, (channels, channels, 3, 3), jnp.float32, -bound, bound)
        self.b1 = jax.random.uniform(k2, (channels,), jnp.float32, -bound, bound)
        self.w2 = jax.random.uniform(k3, (channels, channels, 3, 3), jnp.float32, -bound, bound)
        self.b2 = jax.random.uniform(k4, (channels,), jnp.float32, -bound, bound)

    def __call__(self, x):
        return resblock_forward(x, self.w1, self.b1, self.w2, self.b2)


def _resblock_reference(x, w1, b1, w2, b2, eps=_EPS):
    """Pure-JAX golden reference (matches the PyTorch module)."""
    def conv(v, w, b):
        y = jax.lax.conv_general_dilated(
            v, w, window_strides=(1, 1), padding=((1, 1), (1, 1)),
            dimension_numbers=("NCHW", "OIHW", "NCHW"),
            precision=jax.lax.Precision.HIGHEST)
        return y + b[None, :, None, None]

    def inorm(v):
        mu = jnp.mean(v, axis=(2, 3), keepdims=True)
        cen = v - mu
        var = jnp.mean(cen * cen, axis=(2, 3), keepdims=True)
        return cen * jax.lax.rsqrt(var + eps)

    h = jax.nn.relu(inorm(conv(x, w1, b1)))
    h = inorm(conv(h, w2, b2))
    return h + x


if __name__ == "__main__":
    key = jax.random.PRNGKey(0)
    kx, kp = jax.random.split(key)
    B, C, H, W = 2, 4, 16, 16
    x = jax.random.normal(kx, (B, C, H, W), dtype=jnp.float32)

    block = ResBlock(C, key=kp)
    y = jax.block_until_ready(block(x))

    y_ref = jax.block_until_ready(
        _resblock_reference(x, block.w1, block.b1, block.w2, block.b2))

    assert y.shape == x.shape and y.dtype == x.dtype
    assert np.isfinite(np.asarray(y)).all()
    np.testing.assert_allclose(np.asarray(y), np.asarray(y_ref), rtol=5e-2, atol=5e-2)
    print("KERNEL_OK")
</pallas_src>

<mosaic_0001>
module attributes {stable_mosaic.version = 11 : i64} {
  func.func @_resblock_kernel(%arg0: i32, %arg1: memref<1x8x290xf32, #tpu.memory_space<vmem>>, %arg2: memref<9x8x8xf32, #tpu.memory_space<vmem>>, %arg3: memref<8x1xf32, #tpu.memory_space<vmem>>, %arg4: memref<9x8x8xf32, #tpu.memory_space<vmem>>, %arg5: memref<8x1xf32, #tpu.memory_space<vmem>>, %arg6: memref<1x8x256xf32, #tpu.memory_space<vmem>>, %arg7: memref<8x290xf32, #tpu.memory_space<vmem>>) attributes {dimension_semantics = [#tpu.dimension_semantics<parallel>], iteration_bounds = array<i64: 2>, scalar_prefetch = 0 : i64, scratch_operands = 1 : i64, tpu.core_type = #tpu.core_type<tc>, window_params = [{transform_indices = @transform_0, window_bounds = array<i64: 1, 8, 290>}, {pipeline_mode = #tpu.pipeline_mode<synchronous>, transform_indices = @transform_1, window_bounds = array<i64: 9, 8, 8>}, {pipeline_mode = #tpu.pipeline_mode<synchronous>, transform_indices = @transform_2, window_bounds = array<i64: 8, 1>}, {pipeline_mode = #tpu.pipeline_mode<synchronous>, transform_indices = @transform_3, window_bounds = array<i64: 9, 8, 8>}, {pipeline_mode = #tpu.pipeline_mode<synchronous>, transform_indices = @transform_4, window_bounds = array<i64: 8, 1>}, {transform_indices = @transform_5, window_bounds = array<i64: 1, 8, 256>}]} {
    %0 = tpu.iota {dimensions = array<i32: 1>} : vector<1x256xi32>
    %c16_i32 = arith.constant 16 : i32
    %c0_i32 = arith.constant 0 : i32
    %1 = arith.cmpi eq, %c16_i32, %c0_i32 : i32
    %c1_i32 = arith.constant 1 : i32
    %2 = arith.select %1, %c1_i32, %c16_i32 : i32
    %3 = vector.broadcast %2 : i32 to vector<1x256xi32>
    %4 = arith.remsi %0, %3 : vector<1x256xi32>
    %c0_i32_0 = arith.constant 0 : i32
    %5 = vector.broadcast %c0_i32_0 : i32 to vector<1x256xi32>
    %6 = arith.cmpi ne, %4, %5 : vector<1x256xi32>
    %c0_i32_1 = arith.constant 0 : i32
    %7 = vector.broadcast %c0_i32_1 : i32 to vector<1x256xi32>
    %8 = arith.cmpi slt, %4, %7 : vector<1x256xi32>
    %c0_i32_2 = arith.constant 0 : i32
    %9 = arith.cmpi slt, %2, %c0_i32_2 : i32
    %10 = vector.broadcast %9 : i1 to vector<1x256xi1>
    %11 = vector.broadcast %10 : vector<1x256xi1> to vector<1x256xi1>
    %12 = arith.xori %8, %11 : vector<1x256xi1>
    %13 = arith.andi %12, %6 : vector<1x256xi1>
    %14 = vector.broadcast %2 : i32 to vector<1x256xi32>
    %15 = arith.addi %4, %14 : vector<1x256xi32>
    %16 = arith.select %13, %15, %4 : vector<1x256xi1>, vector<1x256xi32>
    %c1_i32_3 = arith.constant 1 : i32
    %17 = vector.broadcast %c1_i32_3 : i32 to vector<1x256xi32>
    %18 = arith.cmpi sge, %16, %17 : vector<1x256xi32>
    %19 = arith.extui %18 : vector<1x256xi1> to vector<1x256xi32>
    %20 = arith.sitofp %19 : vector<1x256xi32> to vector<1x256xf32>
    %c14_i32 = arith.constant 14 : i32
    %21 = vector.broadcast %c14_i32 : i32 to vector<1x256xi32>
    %22 = arith.cmpi sle, %16, %21 : vector<1x256xi32>
    %23 = arith.extui %22 : vector<1x256xi1> to vector<1x256xi32>
    %24 = arith.sitofp %23 : vector<1x256xi32> to vector<1x256xf32>
    %cst = arith.constant 0.000000e+00 : f32
    %25 = vector.broadcast %cst : f32 to vector<8x256xf32>
    %c0 = arith.constant 0 : index
    %c0_4 = arith.constant 0 : index
    %c0_5 = arith.constant 0 : index
    %26 = vector.load %arg1[%c0, %c0_4, %c0_5] : memref<1x8x290xf32, #tpu.memory_space<vmem>>, vector<1x8x256xf32>
    %27 = vector.shape_cast %26 : vector<1x8x256xf32> to vector<8x256xf32>
    %28 = vector.broadcast %20 : vector<1x256xf32> to vector<8x256xf32>
    %29 = arith.mulf %27, %28 : vector<8x256xf32>
    %c0_6 = arith.constant 0 : index
    %c0_7 = arith.constant 0 : index
    %c0_8 = arith.constant 0 : index
    %30 = vector.load %arg2[%c0_6, %c0_7, %c0_8] : memref<9x8x8xf32, #tpu.memory_space<vmem>>, vector<1x8x8xf32>
    %31 = vector.shape_cast %30 : vector<1x8x8xf32> to vector<8x8xf32>
    %cst_9 = arith.constant dense<0.000000e+00> : vector<8x256xf32>
    %32 = tpu.matmul %31, %29, %cst_9 {dimension_numbers = #tpu.dot_dimension_numbers<[1], [0], [0], [1], [0, 0, 1, 1], [], []>} : vector<8x8xf32>, vector<8x256xf32>, vector<8x256xf32> -> vector<8x256xf32>
    %33 = arith.addf %25, %32 : vector<8x256xf32>
    %c0_10 = arith.constant 0 : index
    %c0_11 = arith.constant 0 : index
    %c1 = arith.constant 1 : index
    %34 = vector.load %arg1[%c0_10, %c0_11, %c1] : memref<1x8x290xf32, #tpu.memory_space<vmem>>, vector<1x8x256xf32>
    %35 = vector.shape_cast %34 : vector<1x8x256xf32> to vector<8x256xf32>
    %c1_12 = arith.constant 1 : index
    %c0_13 = arith.constant 0 : index
    %c0_14 = arith.constant 0 : index
    %36 = vector.load %arg2[%c1_12, %c0_13, %c0_14] : memref<9x8x8xf32, #tpu.memory_space<vmem>>, vector<1x8x8xf32>
    %37 = vector.shape_cast %36 : vector<1x8x8xf32> to vector<8x8xf32>
    %cst_15 = arith.constant dense<0.000000e+00> : vector<8x256xf32>
    %38 = tpu.matmul %37, %35, %cst_15 {dimension_numbers = #tpu.dot_dimension_numbers<[1], [0], [0], [1], [0, 0, 1, 1], [], []>} : vector<8x8xf32>, vector<8x256xf32>, vector<8x256xf32> -> vector<8x256xf32>
    %39 = arith.addf %33, %38 : vector<8x256xf32>
    %c0_16 = arith.constant 0 : index
    %c0_17 = arith.constant 0 : index
    %c2 = arith.constant 2 : index
    %40 = vector.load %arg1[%c0_16, %c0_17, %c2] : memref<1x8x290xf32, #tpu.memory_space<vmem>>, vector<1x8x256xf32>
    %41 = vector.shape_cast %40 : vector<1x8x256xf32> to vector<8x256xf32>
    %42 = vector.broadcast %24 : vector<1x256xf32> to vector<8x256xf32>
    %43 = arith.mulf %41, %42 : vector<8x256xf32>
    %c2_18 = arith.constant 2 : index
    %c0_19 = arith.constant 0 : index
    %c0_20 = arith.constant 0 : index
    %44 = vector.load %arg2[%c2_18, %c0_19, %c0_20] : memref<9x8x8xf32, #tpu.memory_space<vmem>>, vector<1x8x8xf32>
    %45 = vector.shape_cast %44 : vector<1x8x8xf32> to vector<8x8xf32>
    %cst_21 = arith.constant dense<0.000000e+00> : vector<8x256xf32>
    %46 = tpu.matmul %45, %43, %cst_21 {dimension_numbers = #tpu.dot_dimension_numbers<[1], [0], [0], [1], [0, 0, 1, 1], [], []>} : vector<8x8xf32>, vector<8x256xf32>, vector<8x256xf32> -> vector<8x256xf32>
    %47 = arith.addf %39, %46 : vector<8x256xf32>
    %c0_22 = arith.constant 0 : index
    %c0_23 = arith.constant 0 : index
    %c16 = arith.constant 16 : index
    %48 = vector.load %arg1[%c0_22, %c0_23, %c16] : memref<1x8x290xf32, #tpu.memory_space<vmem>>, vector<1x8x256xf32>
    %49 = vector.shape_cast %48 : vector<1x8x256xf32> to vector<8x256xf32>
    %50 = vector.broadcast %20 : vector<1x256xf32> to vector<8x256xf32>
    %51 = arith.mulf %49, %50 : vector<8x256xf32>
    %c3 = arith.constant 3 : index
    %c0_24 = arith.constant 0 : index
    %c0_25 = arith.constant 0 : index
    %52 = vector.load %arg2[%c3, %c0_24, %c0_25] : memref<9x8x8xf32, #tpu.memory_space<vmem>>, vector<1x8x8xf32>
    %53 = vector.shape_cast %52 : vector<1x8x8xf32> to vector<8x8xf32>
    %cst_26 = arith.constant dense<0.000000e+00> : vector<8x256xf32>
    %54 = tpu.matmul %53, %51, %cst_26 {dimension_numbers = #tpu.dot_dimension_numbers<[1], [0], [0], [1], [0, 0, 1, 1], [], []>} : vector<8x8xf32>, vector<8x256xf32>, vector<8x256xf32> -> vector<8x256xf32>
    %55 = arith.addf %47, %54 : vector<8x256xf32>
    %c0_27 = arith.constant 0 : index
    %c0_28 = arith.constant 0 : index
    %c17 = arith.constant 17 : index
    %56 = vector.load %arg1[%c0_27, %c0_28, %c17] : memref<1x8x290xf32, #tpu.memory_space<vmem>>, vector<1x8x256xf32>
    %57 = vector.shape_cast %56 : vector<1x8x256xf32> to vector<8x256xf32>
    %c4 = arith.constant 4 : index
    %c0_29 = arith.constant 0 : index
    %c0_30 = arith.constant 0 : index
    %58 = vector.load %arg2[%c4, %c0_29, %c0_30] : memref<9x8x8xf32, #tpu.memory_space<vmem>>, vector<1x8x8xf32>
    %59 = vector.shape_cast %58 : vector<1x8x8xf32> to vector<8x8xf32>
    %cst_31 = arith.constant dense<0.000000e+00> : vector<8x256xf32>
    %60 = tpu.matmul %59, %57, %cst_31 {dimension_numbers = #tpu.dot_dimension_numbers<[1], [0], [0], [1], [0, 0, 1, 1], [], []>} : vector<8x8xf32>, vector<8x256xf32>, vector<8x256xf32> -> vector<8x256xf32>
    %61 = arith.addf %55, %60 : vector<8x256xf32>
    %c0_32 = arith.constant 0 : index
    %c0_33 = arith.constant 0 : index
    %c18 = arith.constant 18 : index
    %62 = vector.load %arg1[%c0_32, %c0_33, %c18] : memref<1x8x290xf32, #tpu.memory_space<vmem>>, vector<1x8x256xf32>
    %63 = vector.shape_cast %62 : vector<1x8x256xf32> to vector<8x256xf32>
    %64 = vector.broadcast %24 : vector<1x256xf32> to vector<8x256xf32>
    %65 = arith.mulf %63, %64 : vector<8x256xf32>
    %c5 = arith.constant 5 : index
    %c0_34 = arith.constant 0 : index
    %c0_35 = arith.constant 0 : index
    %66 = vector.load %arg2[%c5, %c0_34, %c0_35] : memref<9x8x8xf32, #tpu.memory_space<vmem>>, vector<1x8x8xf32>
    %67 = vector.shape_cast %66 : vector<1x8x8xf32> to vector<8x8xf32>
    %cst_36 = arith.constant dense<0.000000e+00> : vector<8x256xf32>
    %68 = tpu.matmul %67, %65, %cst_36 {dimension_numbers = #tpu.dot_dimension_numbers<[1], [0], [0], [1], [0, 0, 1, 1], [], []>} : vector<8x8xf32>, vector<8x256xf32>, vector<8x256xf32> -> vector<8x256xf32>
    %69 = arith.addf %61, %68 : vector<8x256xf32>
    %c0_37 = arith.constant 0 : index
    %c0_38 = arith.constant 0 : index
    %c32 = arith.constant 32 : index
    %70 = vector.load %arg1[%c0_37, %c0_38, %c32] : memref<1x8x290xf32, #tpu.memory_space<vmem>>, vector<1x8x256xf32>
    %71 = vector.shape_cast %70 : vector<1x8x256xf32> to vector<8x256xf32>
    %72 = vector.broadcast %20 : vector<1x256xf32> to vector<8x256xf32>
    %73 = arith.mulf %71, %72 : vector<8x256xf32>
    %c6 = arith.constant 6 : index
    %c0_39 = arith.constant 0 : index
    %c0_40 = arith.constant 0 : index
    %74 = vector.load %arg2[%c6, %c0_39, %c0_40] : memref<9x8x8xf32, #tpu.memory_space<vmem>>, vector<1x8x8xf32>
    %75 = vector.shape_cast %74 : vector<1x8x8xf32> to vector<8x8xf32>
    %cst_41 = arith.constant dense<0.000000e+00> : vector<8x256xf32>
    %76 = tpu.matmul %75, %73, %cst_41 {dimension_numbers = #tpu.dot_dimension_numbers<[1], [0], [0], [1], [0, 0, 1, 1], [], []>} : vector<8x8xf32>, vector<8x256xf32>, vector<8x256xf32> -> vector<8x256xf32>
    %77 = arith.addf %69, %76 : vector<8x256xf32>
    %c0_42 = arith.constant 0 : index
    %c0_43 = arith.constant 0 : index
    %c33 = arith.constant 33 : index
    %78 = vector.load %arg1[%c0_42, %c0_43, %c33] : memref<1x8x290xf32, #tpu.memory_space<vmem>>, vector<1x8x256xf32>
    %79 = vector.shape_cast %78 : vector<1x8x256xf32> to vector<8x256xf32>
    %c7 = arith.constant 7 : index
    %c0_44 = arith.constant 0 : index
    %c0_45 = arith.constant 0 : index
    %80 = vector.load %arg2[%c7, %c0_44, %c0_45] : memref<9x8x8xf32, #tpu.memory_space<vmem>>, vector<1x8x8xf32>
    %81 = vector.shape_cast %80 : vector<1x8x8xf32> to vector<8x8xf32>
    %cst_46 = arith.constant dense<0.000000e+00> : vector<8x256xf32>
    %82 = tpu.matmul %81, %79, %cst_46 {dimension_numbers = #tpu.dot_dimension_numbers<[1], [0], [0], [1], [0, 0, 1, 1], [], []>} : vector<8x8xf32>, vector<8x256xf32>, vector<8x256xf32> -> vector<8x256xf32>
    %83 = arith.addf %77, %82 : vector<8x256xf32>
    %c0_47 = arith.constant 0 : index
    %c0_48 = arith.constant 0 : index
    %c34 = arith.constant 34 : index
    %84 = vector.load %arg1[%c0_47, %c0_48, %c34] : memref<1x8x290xf32, #tpu.memory_space<vmem>>, vector<1x8x256xf32>
    %85 = vector.shape_cast %84 : vector<1x8x256xf32> to vector<8x256xf32>
    %86 = vector.broadcast %24 : vector<1x256xf32> to vector<8x256xf32>
    %87 = arith.mulf %85, %86 : vector<8x256xf32>
    %c8 = arith.constant 8 : index
    %c0_49 = arith.constant 0 : index
    %c0_50 = arith.constant 0 : index
    %88 = vector.load %arg2[%c8, %c0_49, %c0_50] : memref<9x8x8xf32, #tpu.memory_space<vmem>>, vector<1x8x8xf32>
    %89 = vector.shape_cast %88 : vector<1x8x8xf32> to vector<8x8xf32>
    %cst_51 = arith.constant dense<0.000000e+00> : vector<8x256xf32>
    %90 = tpu.matmul %89, %87, %cst_51 {dimension_numbers = #tpu.dot_dimension_numbers<[1], [0], [0], [1], [0, 0, 1, 1], [], []>} : vector<8x8xf32>, vector<8x256xf32>, vector<8x256xf32> -> vector<8x256xf32>
    %91 = arith.addf %83, %90 : vector<8x256xf32>
    %c0_52 = arith.constant 0 : index
    %c0_53 = arith.constant 0 : index
    %92 = vector.load %arg3[%c0_52, %c0_53] : memref<8x1xf32, #tpu.memory_space<vmem>>, vector<8x1xf32>
    %93 = vector.broadcast %92 : vector<8x1xf32> to vector<8x256xf32>
    %94 = arith.addf %91, %93 : vector<8x256xf32>
    %cst_54 = arith.constant dense<0.000000e+00> : vector<8xf32>
    %95 = vector.multi_reduction <add>, %94, %cst_54 [1] : vector<8x256xf32> to vector<8xf32>
    %96 = vector.shape_cast %95 : vector<8xf32> to vector<8x1xf32>
    %cst_55 = arith.constant 2.560000e+02 : f32
    %97 = vector.broadcast %cst_55 : f32 to vector<8x1xf32>
    %98 = arith.divf %96, %97 : vector<8x1xf32>
    %99 = vector.broadcast %98 : vector<8x1xf32> to vector<8x256xf32>
    %100 = arith.subf %94, %99 : vector<8x256xf32>
    %101 = arith.mulf %100, %100 : vector<8x256xf32>
    %cst_56 = arith.constant dense<0.000000e+00> : vector<8xf32>
    %102 = vector.multi_reduction <add>, %101, %cst_56 [1] : vector<8x256xf32> to vector<8xf32>
    %103 = vector.shape_cast %102 : vector<8xf32> to vector<8x1xf32>
    %cst_57 = arith.constant 2.560000e+02 : f32
    %104 = vector.broadcast %cst_57 : f32 to vector<8x1xf32>
    %105 = arith.divf %103, %104 : vector<8x1xf32>
    %cst_58 = arith.constant 9.99999974E-6 : f32
    %106 = vector.broadcast %cst_58 : f32 to vector<8x1xf32>
    %107 = arith.addf %105, %106 : vector<8x1xf32>
    %108 = math.rsqrt %107 : vector<8x1xf32>
    %109 = vector.broadcast %108 : vector<8x1xf32> to vector<8x256xf32>
    %110 = arith.mulf %100, %109 : vector<8x256xf32>
    %cst_59 = arith.constant 0.000000e+00 : f32
    %111 = vector.broadcast %cst_59 : f32 to vector<8x256xf32>
    %112 = arith.maximumf %110, %111 : vector<8x256xf32>
    %cst_60 = arith.constant 0.000000e+00 : f32
    %113 = vector.broadcast %cst_60 : f32 to vector<8x290xf32>
    %c0_61 = arith.constant 0 : index
    %c0_62 = arith.constant 0 : index
    %114 = vector.load %arg7[%c0_61, %c0_62] : memref<8x290xf32, #tpu.memory_space<vmem>>, vector<8x290xf32>
    tpu.vector_store %arg7[%c0_61, %c0_62], %113 {strides = array<i32>} : memref<8x290xf32, #tpu.memory_space<vmem>>, vector<8x290xf32>,
    %c0_63 = arith.constant 0 : index
    %c17_64 = arith.constant 17 : index
    %115 = vector.load %arg7[%c0_63, %c17_64] : memref<8x290xf32, #tpu.memory_space<vmem>>, vector<8x256xf32>
    tpu.vector_store %arg7[%c0_63, %c17_64], %112 {strides = array<i32>} : memref<8x290xf32, #tpu.memory_space<vmem>>, vector<8x256xf32>,
    %cst_65 = arith.constant 0.000000e+00 : f32
    %116 = vector.broadcast %cst_65 : f32 to vector<8x256xf32>
    %c0_66 = arith.constant 0 : index
    %c0_67 = arith.constant 0 : index
    %117 = vector.load %arg7[%c0_66, %c0_67] : memref<8x290xf32, #tpu.memory_space<vmem>>, vector<8x256xf32>
    %118 = vector.broadcast %20 : vector<1x256xf32> to vector<8x256xf32>
    %119 = arith.mulf %117, %118 : vector<8x256xf32>
    %c0_68 = arith.constant 0 : index
    %c0_69 = arith.constant 0 : index
    %c0_70 = arith.constant 0 : index
    %120 = vector.load %arg4[%c0_68, %c0_69, %c0_70] : memref<9x8x8xf32, #tpu.memory_space<vmem>>, vector<1x8x8xf32>
    %121 = vector.shape_cast %120 : vector<1x8x8xf32> to vector<8x8xf32>
    %cst_71 = arith.constant dense<0.000000e+00> : vector<8x256xf32>
    %122 = tpu.matmul %121, %119, %cst_71 {dimension_numbers = #tpu.dot_dimension_numbers<[1], [0], [0], [1], [0, 0, 1, 1], [], []>} : vector<8x8xf32>, vector<8x256xf32>, vector<8x256xf32> -> vector<8x256xf32>
    %123 = arith.addf %116, %122 : vector<8x256xf32>
    %c0_72 = arith.constant 0 : index
    %c1_73 = arith.constant 1 : index
    %124 = vector.load %arg7[%c0_72, %c1_73] : memref<8x290xf32, #tpu.memory_space<vmem>>, vector<8x256xf32>
    %c1_74 = arith.constant 1 : index
    %c0_75 = arith.constant 0 : index
    %c0_76 = arith.constant 0 : index
    %125 = vector.load %arg4[%c1_74, %c0_75, %c0_76] : memref<9x8x8xf32, #tpu.memory_space<vmem>>, vector<1x8x8xf32>
    %126 = vector.shape_cast %125 : vector<1x8x8xf32> to vector<8x8xf32>
    %cst_77 = arith.constant dense<0.000000e+00> : vector<8x256xf32>
    %127 = tpu.matmul %126, %124, %cst_77 {dimension_numbers = #tpu.dot_dimension_numbers<[1], [0], [0], [1], [0, 0, 1, 1], [], []>} : vector<8x8xf32>, vector<8x256xf32>, vector<8x256xf32> -> vector<8x256xf32>
    %128 = arith.addf %123, %127 : vector<8x256xf32>
    %c0_78 = arith.constant 0 : index
    %c2_79 = arith.constant 2 : index
    %129 = vector.load %arg7[%c0_78, %c2_79] : memref<8x290xf32, #tpu.memory_space<vmem>>, vector<8x256xf32>
    %130 = vector.broadcast %24 : vector<1x256xf32> to vector<8x256xf32>
    %131 = arith.mulf %129, %130 : vector<8x256xf32>
    %c2_80 = arith.constant 2 : index
    %c0_81 = arith.constant 0 : index
    %c0_82 = arith.constant 0 : index
    %132 = vector.load %arg4[%c2_80, %c0_81, %c0_82] : memref<9x8x8xf32, #tpu.memory_space<vmem>>, vector<1x8x8xf32>
    %133 = vector.shape_cast %132 : vector<1x8x8xf32> to vector<8x8xf32>
    %cst_83 = arith.constant dense<0.000000e+00> : vector<8x256xf32>
    %134 = tpu.matmul %133, %131, %cst_83 {dimension_numbers = #tpu.dot_dimension_numbers<[1], [0], [0], [1], [0, 0, 1, 1], [], []>} : vector<8x8xf32>, vector<8x256xf32>, vector<8x256xf32> -> vector<8x256xf32>
    %135 = arith.addf %128, %134 : vector<8x256xf32>
    %c0_84 = arith.constant 0 : index
    %c16_85 = arith.constant 16 : index
    %136 = vector.load %arg7[%c0_84, %c16_85] : memref<8x290xf32, #tpu.memory_space<vmem>>, vector<8x256xf32>
    %137 = vector.broadcast %20 : vector<1x256xf32> to vector<8x256xf32>
    %138 = arith.mulf %136, %137 : vector<8x256xf32>
    %c3_86 = arith.constant 3 : index
    %c0_87 = arith.constant 0 : index
    %c0_88 = arith.constant 0 : index
    %139 = vector.load %arg4[%c3_86, %c0_87, %c0_88] : memref<9x8x8xf32, #tpu.memory_space<vmem>>, vector<1x8x8xf32>
    %140 = vector.shape_cast %139 : vector<1x8x8xf32> to vector<8x8xf32>
    %cst_89 = arith.constant dense<0.000000e+00> : vector<8x256xf32>
    %141 = tpu.matmul %140, %138, %cst_89 {dimension_numbers = #tpu.dot_dimension_numbers<[1], [0], [0], [1], [0, 0, 1, 1], [], []>} : vector<8x8xf32>, vector<8x256xf32>, vector<8x256xf32> -> vector<8x256xf32>
    %142 = arith.addf %135, %141 : vector<8x256xf32>
    %c0_90 = arith.constant 0 : index
    %c17_91 = arith.constant 17 : index
    %143 = vector.load %arg7[%c0_90, %c17_91] : memref<8x290xf32, #tpu.memory_space<vmem>>, vector<8x256xf32>
    %c4_92 = arith.constant 4 : index
    %c0_93 = arith.constant 0 : index
    %c0_94 = arith.constant 0 : index
    %144 = vector.load %arg4[%c4_92, %c0_93, %c0_94] : memref<9x8x8xf32, #tpu.memory_space<vmem>>, vector<1x8x8xf32>
    %145 = vector.shape_cast %144 : vector<1x8x8xf32> to vector<8x8xf32>
    %cst_95 = arith.constant dense<0.000000e+00> : vector<8x256xf32>
    %146 = tpu.matmul %145, %143, %cst_95 {dimension_numbers = #tpu.dot_dimension_numbers<[1], [0], [0], [1], [0, 0, 1, 1], [], []>} : vector<8x8xf32>, vector<8x256xf32>, vector<8x256xf32> -> vector<8x256xf32>
    %147 = arith.addf %142, %146 : vector<8x256xf32>
    %c0_96 = arith.constant 0 : index
    %c18_97 = arith.constant 18 : index
    %148 = vector.load %arg7[%c0_96, %c18_97] : memref<8x290xf32, #tpu.memory_space<vmem>>, vector<8x256xf32>
    %149 = vector.broadcast %24 : vector<1x256xf32> to vector<8x256xf32>
    %150 = arith.mulf %148, %149 : vector<8x256xf32>
    %c5_98 = arith.constant 5 : index
    %c0_99 = arith.constant 0 : index
    %c0_100 = arith.constant 0 : index
    %151 = vector.load %arg4[%c5_98, %c0_99, %c0_100] : memref<9x8x8xf32, #tpu.memory_space<vmem>>, vector<1x8x8xf32>
    %152 = vector.shape_cast %151 : vector<1x8x8xf32> to vector<8x8xf32>
    %cst_101 = arith.constant dense<0.000000e+00> : vector<8x256xf32>
    %153 = tpu.matmul %152, %150, %cst_101 {dimension_numbers = #tpu.dot_dimension_numbers<[1], [0], [0], [1], [0, 0, 1, 1], [], []>} : vector<8x8xf32>, vector<8x256xf32>, vector<8x256xf32> -> vector<8x256xf32>
    %154 = arith.addf %147, %153 : vector<8x256xf32>
    %c0_102 = arith.constant 0 : index
    %c32_103 = arith.constant 32 : index
    %155 = vector.load %arg7[%c0_102, %c32_103] : memref<8x290xf32, #tpu.memory_space<vmem>>, vector<8x256xf32>
    %156 = vector.broadcast %20 : vector<1x256xf32> to vector<8x256xf32>
    %157 = arith.mulf %155, %156 : vector<8x256xf32>
    %c6_104 = arith.constant 6 : index
    %c0_105 = arith.constant 0 : index
    %c0_106 = arith.constant 0 : index
    %158 = vector.load %arg4[%c6_104, %c0_105, %c0_106] : memref<9x8x8xf32, #tpu.memory_space<vmem>>, vector<1x8x8xf32>
    %159 = vector.shape_cast %158 : vector<1x8x8xf32> to vector<8x8xf32>
    %cst_107 = arith.constant dense<0.000000e+00> : vector<8x256xf32>
    %160 = tpu.matmul %159, %157, %cst_107 {dimension_numbers = #tpu.dot_dimension_numbers<[1], [0], [0], [1], [0, 0, 1, 1], [], []>} : vector<8x8xf32>, vector<8x256xf32>, vector<8x256xf32> -> vector<8x256xf32>
    %161 = arith.addf %154, %160 : vector<8x256xf32>
    %c0_108 = arith.constant 0 : index
    %c33_109 = arith.constant 33 : index
    %162 = vector.load %arg7[%c0_108, %c33_109] : memref<8x290xf32, #tpu.memory_space<vmem>>, vector<8x256xf32>
    %c7_110 = arith.constant 7 : index
    %c0_111 = arith.constant 0 : index
    %c0_112 = arith.constant 0 : index
    %163 = vector.load %arg4[%c7_110, %c0_111, %c0_112] : memref<9x8x8xf32, #tpu.memory_space<vmem>>, vector<1x8x8xf32>
    %164 = vector.shape_cast %163 : vector<1x8x8xf32> to vector<8x8xf32>
    %cst_113 = arith.constant dense<0.000000e+00> : vector<8x256xf32>
    %165 = tpu.matmul %164, %162, %cst_113 {dimension_numbers = #tpu.dot_dimension_numbers<[1], [0], [0], [1], [0, 0, 1, 1], [], []>} : vector<8x8xf32>, vector<8x256xf32>, vector<8x256xf32> -> vector<8x256xf32>
    %166 = arith.addf %161, %165 : vector<8x256xf32>
    %c0_114 = arith.constant 0 : index
    %c34_115 = arith.constant 34 : index
    %167 = vector.load %arg7[%c0_114, %c34_115] : memref<8x290xf32, #tpu.memory_space<vmem>>, vector<8x256xf32>
    %168 = vector.broadcast %24 : vector<1x256xf32> to vector<8x256xf32>
    %169 = arith.mulf %167, %168 : vector<8x256xf32>
    %c8_116 = arith.constant 8 : index
    %c0_117 = arith.constant 0 : index
    %c0_118 = arith.constant 0 : index
    %170 = vector.load %arg4[%c8_116, %c0_117, %c0_118] : memref<9x8x8xf32, #tpu.memory_space<vmem>>, vector<1x8x8xf32>
    %171 = vector.shape_cast %170 : vector<1x8x8xf32> to vector<8x8xf32>
    %cst_119 = arith.constant dense<0.000000e+00> : vector<8x256xf32>
    %172 = tpu.matmul %171, %169, %cst_119 {dimension_numbers = #tpu.dot_dimension_numbers<[1], [0], [0], [1], [0, 0, 1, 1], [], []>} : vector<8x8xf32>, vector<8x256xf32>, vector<8x256xf32> -> vector<8x256xf32>
    %173 = arith.addf %166, %172 : vector<8x256xf32>
    %c0_120 = arith.constant 0 : index
    %c0_121 = arith.constant 0 : index
    %174 = vector.load %arg5[%c0_120, %c0_121] : memref<8x1xf32, #tpu.memory_space<vmem>>, vector<8x1xf32>
    %175 = vector.broadcast %174 : vector<8x1xf32> to vector<8x256xf32>
    %176 = arith.addf %173, %175 : vector<8x256xf32>
    %cst_122 = arith.constant dense<0.000000e+00> : vector<8xf32>
    %177 = vector.multi_reduction <add>, %176, %cst_122 [1] : vector<8x256xf32> to vector<8xf32>
    %178 = vector.shape_cast %177 : vector<8xf32> to vector<8x1xf32>
    %cst_123 = arith.constant 2.560000e+02 : f32
    %179 = vector.broadcast %cst_123 : f32 to vector<8x1xf32>
    %180 = arith.divf %178, %179 : vector<8x1xf32>
    %181 = vector.broadcast %180 : vector<8x1xf32> to vector<8x256xf32>
    %182 = arith.subf %176, %181 : vector<8x256xf32>
    %183 = arith.mulf %182, %182 : vector<8x256xf32>
    %cst_124 = arith.constant dense<0.000000e+00> : vector<8xf32>
    %184 = vector.multi_reduction <add>, %183, %cst_124 [1] : vector<8x256xf32> to vector<8xf32>
    %185 = vector.shape_cast %184 : vector<8xf32> to vector<8x1xf32>
    %cst_125 = arith.constant 2.560000e+02 : f32
    %186 = vector.broadcast %cst_125 : f32 to vector<8x1xf32>
    %187 = arith.divf %185, %186 : vector<8x1xf32>
    %cst_126 = arith.constant 9.99999974E-6 : f32
    %188 = vector.broadcast %cst_126 : f32 to vector<8x1xf32>
    %189 = arith.addf %187, %188 : vector<8x1xf32>
    %190 = math.rsqrt %189 : vector<8x1xf32>
    %191 = vector.broadcast %190 : vector<8x1xf32> to vector<8x256xf32>
    %192 = arith.mulf %182, %191 : vector<8x256xf32>
    %c0_127 = arith.constant 0 : index
    %c0_128 = arith.constant 0 : index
    %c17_129 = arith.constant 17 : index
    %193 = vector.load %arg1[%c0_127, %c0_128, %c17_129] : memref<1x8x290xf32, #tpu.memory_space<vmem>>, vector<1x8x256xf32>
    %194 = vector.shape_cast %193 : vector<1x8x256xf32> to vector<8x256xf32>
    %195 = arith.addf %192, %194 : vector<8x256xf32>
    %c0_130 = arith.constant 0 : index
    %c0_131 = arith.constant 0 : index
    %c0_132 = arith.constant 0 : index
    %196 = vector.load %arg6[%c0_130, %c0_131, %c0_132] : memref<1x8x256xf32, #tpu.memory_space<vmem>>, vector<1x8x256xf32>
    %197 = vector.shape_cast %196 : vector<1x8x256xf32> to vector<8x256xf32>
    %198 = vector.shape_cast %195 : vector<8x256xf32> to vector<1x8x256xf32>
    tpu.vector_store %arg6[%c0_130, %c0_131, %c0_132], %198 {strides = array<i32>} : memref<1x8x256xf32, #tpu.memory_space<vmem>>, vector<1x8x256xf32>,
    return
  }
  func.func @transform_0(%arg0: i32) -> (i32, i32, i32) {
    %c0_i32 = arith.constant 0 : i32
    %c0_i32_0 = arith.constant 0 : i32
    %c0_i32_1 = arith.constant 0 : i32
    return %arg0, %c0_i32, %c0_i32_0 : i32, i32, i32
  }
  func.func @transform_1(%arg0: i32) -> (i32, i32, i32) {
    %c0_i32 = arith.constant 0 : i32
    %c0_i32_0 = arith.constant 0 : i32
    %c0_i32_1 = arith.constant 0 : i32
    %c0_i32_2 = arith.constant 0 : i32
    return %c0_i32, %c0_i32_0, %c0_i32_1 : i32, i32, i32
  }
  func.func @transform_2(%arg0: i32) -> (i32, i32) {
    %c0_i32 = arith.constant 0 : i32
    %c0_i32_0 = arith.constant 0 : i32
    %c0_i32_1 = arith.constant 0 : i32
    return %c0_i32, %c0_i32_0 : i32, i32
  }
  func.func @transform_3(%arg0: i32) -> (i32, i32, i32) {
    %c0_i32 = arith.constant 0 : i32
    %c0_i32_0 = arith.constant 0 : i32
    %c0_i32_1 = arith.constant 0 : i32
    %c0_i32_2 = arith.constant 0 : i32
    return %c0_i32, %c0_i32_0, %c0_i32_1 : i32, i32, i32
  }
  func.func @transform_4(%arg0: i32) -> (i32, i32) {
    %c0_i32 = arith.constant 0 : i32
    %c0_i32_0 = arith.constant 0 : i32
    %c0_i32_1 = arith.constant 0 : i32
    return %c0_i32, %c0_i32_0 : i32, i32
  }
  func.func @transform_5(%arg0: i32) -> (i32, i32, i32) {
    %c0_i32 = arith.constant 0 : i32
    %c0_i32_0 = arith.constant 0 : i32
    %c0_i32_1 = arith.constant 0 : i32
    return %arg0, %c0_i32, %c0_i32_0 : i32, i32, i32
  }
}

</mosaic_0001>

<llo_original>
// kernel: tpu_custom_call.1
$region0: #{tpu_custom_call.1}
  #allocation0 [shape = 'u32[]', space=smem, size = 0x4, offset = 0x4, fixed_abs, tag = 'smem constant byte address 0x4 - core index']
  #allocation1 [shape = 'u32[144,128]{1,0:T(1,128)}', space=vmem, size = 0x12000, scoped, tag = 'internal scratch']
  #allocation2 [shape = 'f32[8,290]{1,0:T(8,128)}', space=vmem, size = 0x3000, scoped, tag = 'scratch operand']
  %s0 = inlined_call_operand.vmem [shape: f32[2,8,290], index: 0, kind: input, shape index: {}]
  %s1 = inlined_call_operand.vmem [shape: f32[9,8,8], index: 1, kind: input, shape index: {}]
  %s2 = inlined_call_operand.vmem [shape: f32[8,1], index: 2, kind: input, shape index: {}]
  %s3 = inlined_call_operand.vmem [shape: f32[9,8,8], index: 3, kind: input, shape index: {}]
  %s4 = inlined_call_operand.vmem [shape: f32[8,1], index: 4, kind: input, shape index: {}]
  %s5 = inlined_call_operand.hbm [shape: f32[2,8,256], index: 5, kind: output, shape index: {}]
  %s6 = sld [smem:[#allocation0]]
  $region53: #{tpu_custom_call.1} parent=0
    _
  %s8 = ssub.s32 1, %s6
  %s9 = scalar_select 0, %s8, %s6
  $region1: #{tpu_custom_call.1} parent=0
    #allocation3 [shape = 'u8[16384]{0}', space=vmem, size = 0x4000, scoped, tag = 'output window, operand 0']
    #allocation4 [shape = 's32[2]{0}', space=sflag, size = 0x8, scoped, tag = 'scoped memory for tpu_custom_call.1']
    %10 = vsyncpa [#allocation4], 0
    %s11 = scalar_lea.sflag [#allocation4], 1
    %12 = vsyncpa %s11, 0
    loop: start=0, step=1, limit=4
    $region2: #{tpu_custom_call.1} parent=1 // loop_pre_header
      _
    $region3: #{tpu_custom_call.1} parent=1 // loop_header
      %s14 = sphi 0, %s18
      %p15 = scmp.ge.s32.totalorder %s14, 4
      %s24 = sphi 0, %s26
      %s27 = sphi 0, %s24
      %s28 = sphi 0, %s27
      %s44 = sphi 0, %s28
      %s48 = sphi 0, %s48
      %s50 = sphi 0, %s48
      %s51 = sphi 0, %s50
      %s65 = sphi 0, %s51
      %s69 = sphi 0, %s69
      %s71 = sphi 0, %s69
      %s72 = sphi 0, %s71
      %s86 = sphi 0, %s72
      %s90 = sphi 0, %s90
      %s92 = sphi 0, %s90
      %s93 = sphi 0, %s92
      %s107 = sphi 0, %s93
      %s111 = sphi 0, %s111
      %s113 = sphi 0, %s111
      %s114 = sphi 0, %s113
      %s128 = sphi 0, %s114
      %s134 = sphi 0, %s136
      %s137 = sphi 0, %s134
      %s138 = sphi 0, %s137
      %s154 = sphi 0, %s138
    $region4: #{tpu_custom_call.1} parent=1 // loop_header_branch
      %17 = sbr.rel (%p15) target = $region8
    $region5: #{tpu_custom_call.1} parent=1 // loop_body
      %s19 = ssub.s32 %s14, 1
      %s20 = ssub.s32 %s14, 2
      %s21 = sadd.s32 %s14, 1
      %s22 = ssub.s32 %s14, %s21
      %p23 = scmp.eq.s32.totalorder %s22, 0
      %s25 = sadd.s32 %s24, 1
      %s26 = scalar_select %p23, %s24, %s25
      %p29 = pneg %p23
      %p30 = scmp.eq.s32.totalorder %s14, 1
      %p31 = por %p29, %p30
      %p32 = scmp.ne.s32.totalorder %s24, %s27
      %p33 = scmp.eq.s32.totalorder %s14, 0
      %p34 = por %p32, %p33
      %p35 = scmp.ne.s32.totalorder %s24, %s27
      %p36 = scmp.eq.s32.totalorder %s19, 1
      %p37 = por %p35, %p36
      %p38 = scmp.ne.s32.totalorder %s27, %s28
      %p39 = scmp.eq.s32.totalorder %s19, 0
      %p40 = por %p38, %p39
      %p41 = scmp.ne.s32.totalorder %s27, %s28
      %p42 = scmp.eq.s32.totalorder %s20, 1
      %p43 = por %p41, %p42
      %p45 = scmp.ne.s32.totalorder %s28, %s44
      %p46 = scmp.eq.s32.totalorder %s20, 0
      %p47 = por %p45, %p46
      %s49 = sadd.s32 %s48, 1
      %p52 = scmp.eq.s32.totalorder %s14, 1
      %p53 = scmp.ne.s32.totalorder %s48, %s50
      %p54 = scmp.eq.s32.totalorder %s14, 0
      %p55 = por %p53, %p54
      %p56 = scmp.ne.s32.totalorder %s48, %s50
      %p57 = scmp.eq.s32.totalorder %s19, 1
      %p58 = por %p56, %p57
      %p59 = scmp.ne.s32.totalorder %s50, %s51
      %p60 = scmp.eq.s32.totalorder %s19, 0
      %p61 = por %p59, %p60
      %p62 = scmp.ne.s32.totalorder %s50, %s51
      %p63 = scmp.eq.s32.totalorder %s20, 1
      %p64 = por %p62, %p63
      %p66 = scmp.ne.s32.totalorder %s51, %s65
      %p67 = scmp.eq.s32.totalorder %s20, 0
      %p68 = por %p66, %p67
      %s70 = sadd.s32 %s69, 1
      %p73 = scmp.eq.s32.totalorder %s14, 1
      %p74 = scmp.ne.s32.totalorder %s69, %s71
      %p75 = scmp.eq.s32.totalorder %s14, 0
      %p76 = por %p74, %p75
      %p77 = scmp.ne.s32.totalorder %s69, %s71
      %p78 = scmp.eq.s32.totalorder %s19, 1
      %p79 = por %p77, %p78
      %p80 = scmp.ne.s32.totalorder %s71, %s72
      %p81 = scmp.eq.s32.totalorder %s19, 0
      %p82 = por %p80, %p81
      %p83 = scmp.ne.s32.totalorder %s71, %s72
      %p84 = scmp.eq.s32.totalorder %s20, 1
      %p85 = por %p83, %p84
      %p87 = scmp.ne.s32.totalorder %s72, %s86
      %p88 = scmp.eq.s32.totalorder %s20, 0
      %p89 = por %p87, %p88
      %s91 = sadd.s32 %s90, 1
      %p94 = scmp.eq.s32.totalorder %s14, 1
      %p95 = scmp.ne.s32.totalorder %s90, %s92
      %p96 = scmp.eq.s32.totalorder %s14, 0
      %p97 = por %p95, %p96
      %p98 = scmp.ne.s32.totalorder %s90, %s92
      %p99 = scmp.eq.s32.totalorder %s19, 1
      %p100 = por %p98, %p99
      %p101 = scmp.ne.s32.totalorder %s92, %s93
      %p102 = scmp.eq.s32.totalorder %s19, 0
      %p103 = por %p101, %p102
      %p104 = scmp.ne.s32.totalorder %s92, %s93
      %p105 = scmp.eq.s32.totalorder %s20, 1
      %p106 = por %p104, %p105
      %p108 = scmp.ne.s32.totalorder %s93, %s107
      %p109 = scmp.eq.s32.totalorder %s20, 0
      %p110 = por %p108, %p109
      %s112 = sadd.s32 %s111, 1
      %p115 = scmp.eq.s32.totalorder %s14, 1
      %p116 = scmp.ne.s32.totalorder %s111, %s113
      %p117 = scmp.eq.s32.totalorder %s14, 0
      %p118 = por %p116, %p117
      %p119 = scmp.ne.s32.totalorder %s111, %s113
      %p120 = scmp.eq.s32.totalorder %s19, 1
      %p121 = por %p119, %p120
      %p122 = scmp.ne.s32.totalorder %s113, %s114
      %p123 = scmp.eq.s32.totalorder %s19, 0
      %p124 = por %p122, %p123
      %p125 = scmp.ne.s32.totalorder %s113, %s114
      %p126 = scmp.eq.s32.totalorder %s20, 1
      %p127 = por %p125, %p126
      %p129 = scmp.ne.s32.totalorder %s114, %s128
      %p130 = scmp.eq.s32.totalorder %s20, 0
      %p131 = por %p129, %p130
      %s132 = ssub.s32 %s14, %s21
      %p133 = scmp.eq.s32.totalorder %s132, 0
      %s135 = sadd.s32 %s134, 1
      %s136 = scalar_select %p133, %s134, %s135
      %p139 = pneg %p133
      %p140 = scmp.eq.s32.totalorder %s14, 1
      %p141 = por %p139, %p140
      %p142 = scmp.ne.s32.totalorder %s134, %s137
      %p143 = scmp.eq.s32.totalorder %s14, 0
      %p144 = por %p142, %p143
      %p145 = scmp.ne.s32.totalorder %s134, %s137
      %p146 = scmp.eq.s32.totalorder %s19, 1
      %p147 = por %p145, %p146
      %p148 = scmp.ne.s32.totalorder %s137, %s138
      %p149 = scmp.eq.s32.totalorder %s19, 0
      %p150 = por %p148, %p149
      %p151 = scmp.ne.s32.totalorder %s137, %s138
      %p152 = scmp.eq.s32.totalorder %s20, 1
      %p153 = por %p151, %p152
      %p155 = scmp.ne.s32.totalorder %s138, %s154
      %p156 = scmp.eq.s32.totalorder %s20, 0
      %p157 = por %p155, %p156
      %p158 = scmp.le.s32.totalorder 1, %s14
      %p159 = scmp.lt.s32.totalorder %s14, 3
      %p160 = pnand %p158, %p159
      %p161 = pneg %p160
      // Predicated region
      $region9: #{tpu_custom_call.1} parent=5 // pred_check
        _
      $region10: #{tpu_custom_call.1} parent=5 // pred_check_branch
        %163 = sbr.rel (%p160) target = $region12
      $region11: #{tpu_custom_call.1} parent=5 // pred_region
        %s164 = ssub.s32 %s14, 1
        // Predicated region
        $region13: #{tpu_custom_call.1} parent=11 // pred_check
          %p165 = pneg %p61
        $region14: #{tpu_custom_call.1} parent=11 // pred_check_branch
          %167 = sbr.rel (%p165) target = $region16
        $region15: #{tpu_custom_call.1} parent=11 // pred_region
          _
        $region16: #{tpu_custom_call.1} parent=11 // pred_fallthru
          _
        // Predicated region
        $region17: #{tpu_custom_call.1} parent=11 // pred_check
          %p168 = pneg %p82
        $region18: #{tpu_custom_call.1} parent=11 // pred_check_branch
          %170 = sbr.rel (%p168) target = $region20
        $region19: #{tpu_custom_call.1} parent=11 // pred_region
          _
        $region20: #{tpu_custom_call.1} parent=11 // pred_fallthru
          _
        // Predicated region
        $region21: #{tpu_custom_call.1} parent=11 // pred_check
          %p171 = pneg %p103
        $region22: #{tpu_custom_call.1} parent=11 // pred_check_branch
          %173 = sbr.rel (%p171) target = $region24
        $region23: #{tpu_custom_call.1} parent=11 // pred_region
          _
        $region24: #{tpu_custom_call.1} parent=11 // pred_fallthru
          _
        // Predicated region
        $region25: #{tpu_custom_call.1} parent=11 // pred_check
          %p174 = pneg %p124
        $region26: #{tpu_custom_call.1} parent=11 // pred_check_branch
          %176 = sbr.rel (%p174) target = $region28
        $region27: #{tpu_custom_call.1} parent=11 // pred_region
          _
        $region28: #{tpu_custom_call.1} parent=11 // pred_fallthru
          _
      $region12: #{tpu_custom_call.1} parent=5 // pred_fallthru
        _
      %p177 = scmp.lt.s32.totalorder %s14, 2
      // Predicated region
      $region29: #{tpu_custom_call.1} parent=5 // pred_check
        %p178 = pneg %p177
      $region30: #{tpu_custom_call.1} parent=5 // pred_check_branch
        %180 = sbr.rel (%p178) target = $region32
      $region31: #{tpu_custom_call.1} parent=5 // pred_region
        // Predicated region
        $region33: #{tpu_custom_call.1} parent=31 // pred_check
          %p181 = pneg %p34
        $region34: #{tpu_custom_call.1} parent=31 // pred_check_branch
          %183 = sbr.rel (%p181) target = $region36
        $region35: #{tpu_custom_call.1} parent=31 // pred_region
          %p184 = scmp.lt.s32.totalorder %s14, 1
          %s185 = scalar_select %p184, %s14, 1
          %s186 = smul.addr %s185, 3
          %s187 = smul.addr %s186, 8
          %s188 = scalar_lea.vmem %s0, %s187
        $region36: #{tpu_custom_call.1} parent=31 // pred_fallthru
          _
      $region32: #{tpu_custom_call.1} parent=5 // pred_fallthru
        _
      %p189 = scmp.le.s32.totalorder 1, %s14
      %p190 = scmp.lt.s32.totalorder %s14, 3
      %p191 = pnand %p189, %p190
      %p192 = pneg %p191
      // Predicated region
      $region37: #{tpu_custom_call.1} parent=5 // pred_check
        _
      $region38: #{tpu_custom_call.1} parent=5 // pred_check_branch
        %194 = sbr.rel (%p191) target = $region40
      $region39: #{tpu_custom_call.1} parent=5 // pred_region
        %s195 = ssub.s32 %s14, 1
        %p196 = scmp.lt.s32.totalorder %s19, 1
        %s197 = scalar_select %p196, %s19, 1
        %s198 = smul.addr %s197, 3
        %s199 = smul.addr %s198, 8
        %s200 = scalar_lea.vmem %s0, %s199
        %p201 = pneg %p40
        %p202 = pneg %p37
        %p203 = pneg %p61
        %p204 = pneg %p58
        %p205 = pneg %p82
        %p206 = pneg %p79
        %p207 = pneg %p103
        %p208 = pneg %p100
        %p209 = pneg %p124
        %p210 = pneg %p121
        %p211 = pneg %p150
        %p212 = pneg %p147
        %s213 = sand.u32 %s137, 1
        %s214 = scalar_lea.sflag [#allocation4], %s213
        %s215 = sand.u32 %s137, 1
        %s216 = smul.addr %s215, 16
        %s217 = scalar_lea.vmem [#allocation3], %s216
        %p218 = scmp.lt.s32.totalorder %s19, 1
        %s219 = scalar_select %p218, %s19, 1
        %s220 = smul.addr %s219, 3
        %s221 = smul.addr %s220, 8
        %s222 = scalar_lea.vmem %s0, %s221
        %v223 = vlaneseq
        %v224 = vand.u32 %v223, 127
        %v225 = vadd.s32 %v224, 128
        %vm226 = vcmp.lt.s32.totalorder %v224, 0
        %v227 = vsub.s32 0, %v224
        %v228 = vsel %vm226, %v227, %v224
        %v229 = vshrl.u32 %v228, 4
        %v230 = vand.u32 %v228, 15
        %v231 = vsub.s32 0, %v230
        %v232 = vsel %vm226, %v231, %v230
        %vm233 = vcmp.lt.s32.totalorder %v225, 0
        %v234 = vsub.s32 0, %v225
        %v235 = vsel %vm233, %v234, %v225
        %v236 = vshrl.u32 %v235, 4
        %v237 = vand.u32 %v235, 15
        %v238 = vsub.s32 0, %v237
        %v239 = vsel %vm233, %v238, %v237
        %vm240 = vcmp.ne.s32.totalorder %v232, 0
        %vm241 = vcmp.ne.s32.totalorder %v239, 0
        %vm242 = vcmp.lt.s32.totalorder %v232, 0
        %vm243 = vcmp.lt.s32.totalorder %v239, 0
        %vm244 = vmand %vm242, %vm240
        %vm245 = vmand %vm243, %vm241
        %v246 = vadd.s32 %v232, 16
        %v247 = vadd.s32 %v239, 16
        %v248 = vsel %vm244, %v246, %v232
        %v249 = vsel %vm245, %v247, %v239
        %vm250 = vcmp.ge.s32.totalorder %v248, 1
        %vm251 = vcmp.ge.s32.totalorder %v249, 1
        %v252 = vsel %vm250, 1, 0
        %v253 = vsel %vm251, 1, 0
        %v254 = vcvt.s32.f32 %v252
        %v255 = vcvt.s32.f32 %v253
        %vm256 = vcmp.le.s32.totalorder %v248, 14
        %vm257 = vcmp.le.s32.totalorder %v249, 14
        %v258 = vsel %vm256, 1, 0
        %v259 = vsel %vm257, 1, 0
        %v260 = vcvt.s32.f32 %v258
        %v261 = vcvt.s32.f32 %v259
        %v262 = vld [vmem:[%s222] sm:$0xff]
        %v263 = vld [vmem:[%s222 + $0x8] sm:$0xff]
        %v264 = vmul.f32 %v262, %v254
        %v265 = vmul.f32 %v263, %v255
        %v266 = vld [vmem:[%s1] sm:$0xff]
        %v267 = vld [vmem:[%s222 + $0x10] sm:$0xff]
        %s268 = scalar_lea.vmem %s1, 8
        %v269 = vld [vmem:[%s268] sm:$0xff]
        %273 = vrot.lane.b32.xlu0 %v262, 127
        %v274 = vpop.permute.xlu0 %273
        %275 = vrot.lane.b32.xlu0 %v263, 127
        %v276 = vpop.permute.xlu0 %275
        %277 = vrot.lane.b32.xlu0 %v267, 127
        %v278 = vpop.permute.xlu0 %277
        %vm279 = vcmask 1039360
        %v280 = vsel %vm279, %v274, %v276
        %v281 = vsel %vm279, %v276, %v278
        %vm284 = vcmask 64512
        %v286 = vsel %vm284, %v269, 0
        %288 = vmatprep.subr.mxu0 0.0
        %289 = vmatpush1.msra.mxu0 0.0
        %290 = vmatprep.subr.mxu0 0.0
        %291 = vmatpush1.msra.mxu0 0.0
        %292 = vmatprep.subr.mxu0 0.0
        %293 = vmatpush1.msra.mxu0 0.0
        %294 = vmatprep.subr.mxu0 0.0
        %295 = vmatpush1.msra.mxu0 0.0
        %296 = vmatprep.subr.mxu0 0.0
        %297 = vmatpush1.msra.mxu0 0.0
        %298 = vmatprep.subr.mxu0 0.0
        %299 = vmatpush1.msra.mxu0 0.0
        %300 = vmatprep.subr.mxu0 0.0
        %301 = vmatpush1.msra.mxu0 0.0
        %302 = vmatprep.subr.mxu0 0.0
        %303 = vmatpush1.msra.mxu0 0.0
        %304 = vmatprep.subr.mxu0 0.0
        %305 = vmatpush1.msra.mxu0 0.0
        %306 = vmatprep.subr.mxu0 0.0
        %307 = vmatpush1.msra.mxu0 0.0
        %308 = vmatprep.subr.mxu0 0.0
        %309 = vmatpush1.msra.mxu0 0.0
        %310 = vmatprep.subr.mxu0 0.0
        %311 = vmatpush1.msra.mxu0 0.0
        %312 = vmatprep.subr.mxu0 0.0
        %313 = vmatpush1.msra.mxu0 0.0
        %314 = vmatprep.subr.mxu0 0.0
        %315 = vmatpush1.msra.mxu0 0.0
        %316 = vmatprep.subr.mxu0 0.0
        %317 = vmatpush1.msra.mxu0 0.0
        %318 = vmatprep.subr.mxu0 %v281
        %319 = vmatpush1.msra.mxu0 %v280
        %320 = vmatprep.subr.mxu0 0.0
        %321 = vmatpush2.msra.mxu0 0.0
        %322 = vmatprep.subr.mxu0 0.0
        %323 = vmatpush2.msra.mxu0 0.0
        %324 = vmatprep.subr.mxu0 0.0
        %325 = vmatpush2.msra.mxu0 0.0
        %326 = vmatprep.subr.mxu0 0.0
        %327 = vmatpush2.msra.mxu0 0.0
        %328 = vmatprep.subr.mxu0 0.0
        %329 = vmatpush2.msra.mxu0 0.0
        %330 = vmatprep.subr.mxu0 0.0
        %331 = vmatpush2.msra.mxu0 0.0
        %332 = vmatprep.subr.mxu0 0.0
        %333 = vmatpush2.msra.mxu0 0.0
        %334 = vmatprep.subr.mxu0 0.0
        %335 = vmatpush2.msra.mxu0 0.0
        %336 = vmatprep.subr.mxu0 0.0
        %337 = vmatpush2.msra.mxu0 0.0
        %338 = vmatprep.subr.mxu0 0.0
        %339 = vmatpush2.msra.mxu0 0.0
        %340 = vmatprep.subr.mxu0 0.0
        %341 = vmatpush2.msra.mxu0 0.0
        %342 = vmatprep.subr.mxu0 0.0
        %343 = vmatpush2.msra.mxu0 0.0
        %344 = vmatprep.subr.mxu0 0.0
        %345 = vmatpush2.msra.mxu0 0.0
        %346 = vmatprep.subr.mxu0 0.0
        %347 = vmatpush2.msra.mxu0 0.0
        %348 = vmatprep.subr.mxu0 0.0
        %349 = vmatpush2.msra.mxu0 0.0
        %350 = vmatprep.subr.mxu0 0.0
        %351 = vmatpush2.msra.mxu0 0.0
        %352 = vmatprep.mubr.f32.mxu0 0.0
        %353 = vmatmul.mubr.f32.gmra.mxu0 %v286
        %v354 = vpop.f32.mrf.mxu0
        %v355 = vadd.f32 0.0, %v354
        %v356 = vpop.f32.mrf.mxu0
        %v357 = vadd.f32 0.0, %v356
        %358 = vdwg.mxu0
        %v360 = vsel %vm284, %v266, 0
        %362 = vmatprep.subr.mxu0 0.0
        %363 = vmatpush1.msra.mxu0 0.0
        %364 = vmatprep.subr.mxu0 0.0
        %365 = vmatpush1.msra.mxu0 0.0
        %366 = vmatprep.subr.mxu0 0.0
        %367 = vmatpush1.msra.mxu0 0.0
        %368 = vmatprep.subr.mxu0 0.0
        %369 = vmatpush1.msra.mxu0 0.0
        %370 = vmatprep.subr.mxu0 0.0
        %371 = vmatpush1.msra.mxu0 0.0
        %372 = vmatprep.subr.mxu0 0.0
        %373 = vmatpush1.msra.mxu0 0.0
        %374 = vmatprep.subr.mxu0 0.0
        %375 = vmatpush1.msra.mxu0 0.0
        %376 = vmatprep.subr.mxu0 0.0
        %377 = vmatpush1.msra.mxu0 0.0
        %378 = vmatprep.subr.mxu0 0.0
        %379 = vmatpush1.msra.mxu0 0.0
        %380 = vmatprep.subr.mxu0 0.0
        %381 = vmatpush1.msra.mxu0 0.0
        %382 = vmatprep.subr.mxu0 0.0
        %383 = vmatpush1.msra.mxu0 0.0
        %384 = vmatprep.subr.mxu0 0.0
        %385 = vmatpush1.msra.mxu0 0.0
        %386 = vmatprep.subr.mxu0 0.0
        %387 = vmatpush1.msra.mxu0 0.0
        %388 = vmatprep.subr.mxu0 0.0
        %389 = vmatpush1.msra.mxu0 0.0
        %390 = vmatprep.subr.mxu0 0.0
        %391 = vmatpush1.msra.mxu0 0.0
        %392 = vmatprep.subr.mxu0 %v265
        %393 = vmatpush1.msra.mxu0 %v264
        %394 = vmatprep.subr.mxu0 0.0
        %395 = vmatpush2.msra.mxu0 0.0
        %396 = vmatprep.subr.mxu0 0.0
        %397 = vmatpush2.msra.mxu0 0.0
        %398 = vmatprep.subr.mxu0 0.0
        %399 = vmatpush2.msra.mxu0 0.0
        %400 = vmatprep.subr.mxu0 0.0
        %401 = vmatpush2.msra.mxu0 0.0
        %402 = vmatprep.subr.mxu0 0.0
        %403 = vmatpush2.msra.mxu0 0.0
        %404 = vmatprep.subr.mxu0 0.0
        %405 = vmatpush2.msra.mxu0 0.0
        %406 = vmatprep.subr.mxu0 0.0
        %407 = vmatpush2.msra.mxu0 0.0
        %408 = vmatprep.subr.mxu0 0.0
        %409 = vmatpush2.msra.mxu0 0.0
        %410 = vmatprep.subr.mxu0 0.0
        %411 = vmatpush2.msra.mxu0 0.0
        %412 = vmatprep.subr.mxu0 0.0
        %413 = vmatpush2.msra.mxu0 0.0
        %414 = vmatprep.subr.mxu0 0.0
        %415 = vmatpush2.msra.mxu0 0.0
        %416 = vmatprep.subr.mxu0 0.0
        %417 = vmatpush2.msra.mxu0 0.0
        %418 = vmatprep.subr.mxu0 0.0
        %419 = vmatpush2.msra.mxu0 0.0
        %420 = vmatprep.subr.mxu0 0.0
        %421 = vmatpush2.msra.mxu0 0.0
        %422 = vmatprep.subr.mxu0 0.0
        %423 = vmatpush2.msra.mxu0 0.0
        %424 = vmatprep.subr.mxu0 0.0
        %425 = vmatpush2.msra.mxu0 0.0
        %426 = vmatprep.mubr.f32.mxu0 0.0
        %427 = vmatmul.mubr.f32.gmra.mxu0 %v360
        %v428 = vpop.f32.mrf.mxu0
        %v429 = vadd.f32 %v355, %v428
        %v430 = vpop.f32.mrf.mxu0
        %v431 = vadd.f32 %v357, %v430
        %432 = vdwg.mxu0
        %435 = vrot.lane.b32.xlu0 %v260, 2
        %v436 = vpop.permute.xlu0 %435
        %437 = vrot.lane.b32.xlu0 %v261, 2
        %v438 = vpop.permute.xlu0 %437
        %vm439 = vcmask 15360
        %v440 = vsel %vm439, %v436, %v438
        %v444 = vmul.f32 %v262, %v436
        %v445 = vmul.f32 %v263, %v440
        %v446 = vmul.f32 %v267, %v438
        %s447 = scalar_lea.vmem %s1, 16
        %v448 = vld [vmem:[%s447] sm:$0xff]
        %452 = vrot.lane.b32.xlu0 %v444, 126
        %v453 = vpop.permute.xlu0 %452
        %454 = vrot.lane.b32.xlu0 %v445, 126
        %v455 = vpop.permute.xlu0 %454
        %456 = vrot.lane.b32.xlu0 %v446, 126
        %v457 = vpop.permute.xlu0 %456
        %vm458 = vcmask 1031168
        %v459 = vsel %vm458, %v453, %v455
        %v460 = vsel %vm458, %v455, %v457
        %v464 = vsel %vm284, %v448, 0
        %466 = vmatprep.subr.mxu0 0.0
        %467 = vmatpush1.msra.mxu0 0.0
        %468 = vmatprep.subr.mxu0 0.0
        %469 = vmatpush1.msra.mxu0 0.0
        %470 = vmatprep.subr.mxu0 0.0
        %471 = vmatpush1.msra.mxu0 0.0
        %472 = vmatprep.subr.mxu0 0.0
        %473 = vmatpush1.msra.mxu0 0.0
        %474 = vmatprep.subr.mxu0 0.0
        %475 = vmatpush1.msra.mxu0 0.0
        %476 = vmatprep.subr.mxu0 0.0
        %477 = vmatpush1.msra.mxu0 0.0
        %478 = vmatprep.subr.mxu0 0.0
        %479 = vmatpush1.msra.mxu0 0.0
        %480 = vmatprep.subr.mxu0 0.0
        %481 = vmatpush1.msra.mxu0 0.0
        %482 = vmatprep.subr.mxu0 0.0
        %483 = vmatpush1.msra.mxu0 0.0
        %484 = vmatprep.subr.mxu0 0.0
        %485 = vmatpush1.msra.mxu0 0.0
        %486 = vmatprep.subr.mxu0 0.0
        %487 = vmatpush1.msra.mxu0 0.0
        %488 = vmatprep.subr.mxu0 0.0
        %489 = vmatpush1.msra.mxu0 0.0
        %490 = vmatprep.subr.mxu0 0.0
        %491 = vmatpush1.msra.mxu0 0.0
        %492 = vmatprep.subr.mxu0 0.0
        %493 = vmatpush1.msra.mxu0 0.0
        %494 = vmatprep.subr.mxu0 0.0
        %495 = vmatpush1.msra.mxu0 0.0
        %496 = vmatprep.subr.mxu0 %v460
        %497 = vmatpush1.msra.mxu0 %v459
        %498 = vmatprep.subr.mxu0 0.0
        %499 = vmatpush2.msra.mxu0 0.0
        %500 = vmatprep.subr.mxu0 0.0
        %501 = vmatpush2.msra.mxu0 0.0
        %502 = vmatprep.subr.mxu0 0.0
        %503 = vmatpush2.msra.mxu0 0.0
        %504 = vmatprep.subr.mxu0 0.0
        %505 = vmatpush2.msra.mxu0 0.0
        %506 = vmatprep.subr.mxu0 0.0
        %507 = vmatpush2.msra.mxu0 0.0
        %508 = vmatprep.subr.mxu0 0.0
        %509 = vmatpush2.msra.mxu0 0.0
        %510 = vmatprep.subr.mxu0 0.0
        %511 = vmatpush2.msra.mxu0 0.0
        %512 = vmatprep.subr.mxu0 0.0
        %513 = vmatpush2.msra.mxu0 0.0
        %514 = vmatprep.subr.mxu0 0.0
        %515 = vmatpush2.msra.mxu0 0.0
        %516 = vmatprep.subr.mxu0 0.0
        %517 = vmatpush2.msra.mxu0 0.0
        %518 = vmatprep.subr.mxu0 0.0
        %519 = vmatpush2.msra.mxu0 0.0
        %520 = vmatprep.subr.mxu0 0.0
        %521 = vmatpush2.msra.mxu0 0.0
        %522 = vmatprep.subr.mxu0 0.0
        %523 = vmatpush2.msra.mxu0 0.0
        %524 = vmatprep.subr.mxu0 0.0
        %525 = vmatpush2.msra.mxu0 0.0
        %526 = vmatprep.subr.mxu0 0.0
        %527 = vmatpush2.msra.mxu0 0.0
        %528 = vmatprep.subr.mxu0 0.0
        %529 = vmatpush2.msra.mxu0 0.0
        %530 = vmatprep.mubr.f32.mxu0 0.0
        %531 = vmatmul.mubr.f32.gmra.mxu0 %v464
        %v532 = vpop.f32.mrf.mxu0
        %v533 = vadd.f32 0.0, %v532
        %v534 = vpop.f32.mrf.mxu0
        %v535 = vadd.f32 0.0, %v534
        %536 = vdwg.mxu0
        %v537 = vadd.f32 %v429, %v533
        %v538 = vadd.f32 %v431, %v535
        %541 = vrot.lane.b32.xlu0 %v254, 16
        %v542 = vpop.permute.xlu0 %541
        %543 = vrot.lane.b32.xlu0 %v255, 16
        %v544 = vpop.permute.xlu0 %543
        %vm545 = vcmask 130048
        %v546 = vsel %vm545, %v542, %v544
        %v550 = vmul.f32 %v262, %v542
        %v551 = vmul.f32 %v263, %v546
        %v552 = vmul.f32 %v267, %v544
        %s553 = scalar_lea.vmem %s1, 24
        %v554 = vld [vmem:[%s553] sm:$0xff]
        %558 = vrot.lane.b32.xlu0 %v550, 112
        %v559 = vpop.permute.xlu0 %558
        %560 = vrot.lane.b32.xlu0 %v551, 112
        %v561 = vpop.permute.xlu0 %560
        %562 = vrot.lane.b32.xlu0 %v552, 112
        %v563 = vpop.permute.xlu0 %562
        %vm564 = vcmask 916480
        %v565 = vsel %vm564, %v559, %v561
        %v566 = vsel %vm564, %v561, %v563
        %v570 = vsel %vm284, %v554, 0
        %572 = vmatprep.subr.mxu0 0.0
        %573 = vmatpush1.msra.mxu0 0.0
        %574 = vmatprep.subr.mxu0 0.0
        %575 = vmatpush1.msra.mxu0 0.0
        %576 = vmatprep.subr.mxu0 0.0
        %577 = vmatpush1.msra.mxu0 0.0
        %578 = vmatprep.subr.mxu0 0.0
        %579 = vmatpush1.msra.mxu0 0.0
        %580 = vmatprep.subr.mxu0 0.0
        %581 = vmatpush1.msra.mxu0 0.0
        %582 = vmatprep.subr.mxu0 0.0
        %583 = vmatpush1.msra.mxu0 0.0
        %584 = vmatprep.subr.mxu0 0.0
        %585 = vmatpush1.msra.mxu0 0.0
        %586 = vmatprep.subr.mxu0 0.0
        %587 = vmatpush1.msra.mxu0 0.0
        %588 = vmatprep.subr.mxu0 0.0
        %589 = vmatpush1.msra.mxu0 0.0
        %590 = vmatprep.subr.mxu0 0.0
        %591 = vmatpush1.msra.mxu0 0.0
        %592 = vmatprep.subr.mxu0 0.0
        %593 = vmatpush1.msra.mxu0 0.0
        %594 = vmatprep.subr.mxu0 0.0
        %595 = vmatpush1.msra.mxu0 0.0
        %596 = vmatprep.subr.mxu0 0.0
        %597 = vmatpush1.msra.mxu0 0.0
        %598 = vmatprep.subr.mxu0 0.0
        %599 = vmatpush1.msra.mxu0 0.0
        %600 = vmatprep.subr.mxu0 0.0
        %601 = vmatpush1.msra.mxu0 0.0
        %602 = vmatprep.subr.mxu0 %v566
        %603 = vmatpush1.msra.mxu0 %v565
        %604 = vmatprep.subr.mxu0 0.0
        %605 = vmatpush2.msra.mxu0 0.0
        %606 = vmatprep.subr.mxu0 0.0
        %607 = vmatpush2.msra.mxu0 0.0
        %608 = vmatprep.subr.mxu0 0.0
        %609 = vmatpush2.msra.mxu0 0.0
        %610 = vmatprep.subr.mxu0 0.0
        %611 = vmatpush2.msra.mxu0 0.0
        %612 = vmatprep.subr.mxu0 0.0
        %613 = vmatpush2.msra.mxu0 0.0
        %614 = vmatprep.subr.mxu0 0.0
        %615 = vmatpush2.msra.mxu0 0.0
        %616 = vmatprep.subr.mxu0 0.0
        %617 = vmatpush2.msra.mxu0 0.0
        %618 = vmatprep.subr.mxu0 0.0
        %619 = vmatpush2.msra.mxu0 0.0
        %620 = vmatprep.subr.mxu0 0.0
        %621 = vmatpush2.msra.mxu0 0.0
        %622 = vmatprep.subr.mxu0 0.0
        %623 = vmatpush2.msra.mxu0 0.0
        %624 = vmatprep.subr.mxu0 0.0
        %625 = vmatpush2.msra.mxu0 0.0
        %626 = vmatprep.subr.mxu0 0.0
        %627 = vmatpush2.msra.mxu0 0.0
        %628 = vmatprep.subr.mxu0 0.0
        %629 = vmatpush2.msra.mxu0 0.0
        %630 = vmatprep.subr.mxu0 0.0
        %631 = vmatpush2.msra.mxu0 0.0
        %632 = vmatprep.subr.mxu0 0.0
        %633 = vmatpush2.msra.mxu0 0.0
        %634 = vmatprep.subr.mxu0 0.0
        %635 = vmatpush2.msra.mxu0 0.0
        %636 = vmatprep.mubr.f32.mxu0 0.0
        %637 = vmatmul.mubr.f32.gmra.mxu0 %v570
        %v638 = vpop.f32.mrf.mxu0
        %v639 = vadd.f32 0.0, %v638
        %v640 = vpop.f32.mrf.mxu0
        %v641 = vadd.f32 0.0, %v640
        %642 = vdwg.mxu0
        %v643 = vadd.f32 %v537, %v639
        %v644 = vadd.f32 %v538, %v641
        %s645 = scalar_lea.vmem %s1, 32
        %v646 = vld [vmem:[%s645] sm:$0xff]
        %647 = vrot.lane.b32.xlu0 %v262, 111
        %v648 = vpop.permute.xlu0 %647
        %649 = vrot.lane.b32.xlu0 %v263, 111
        %v650 = vpop.permute.xlu0 %649
        %651 = vrot.lane.b32.xlu0 %v267, 111
        %v652 = vpop.permute.xlu0 %651
        %vm653 = vcmask 908288
        %v654 = vsel %vm653, %v648, %v650
        %v655 = vsel %vm653, %v650, %v652
        %v659 = vsel %vm284, %v646, 0
        %661 = vmatprep.subr.mxu0 0.0
        %662 = vmatpush1.msra.mxu0 0.0
        %663 = vmatprep.subr.mxu0 0.0
        %664 = vmatpush1.msra.mxu0 0.0
        %665 = vmatprep.subr.mxu0 0.0
        %666 = vmatpush1.msra.mxu0 0.0
        %667 = vmatprep.subr.mxu0 0.0
        %668 = vmatpush1.msra.mxu0 0.0
        %669 = vmatprep.subr.mxu0 0.0
        %670 = vmatpush1.msra.mxu0 0.0
        %671 = vmatprep.subr.mxu0 0.0
        %672 = vmatpush1.msra.mxu0 0.0
        %673 = vmatprep.subr.mxu0 0.0
        %674 = vmatpush1.msra.mxu0 0.0
        %675 = vmatprep.subr.mxu0 0.0
        %676 = vmatpush1.msra.mxu0 0.0
        %677 = vmatprep.subr.mxu0 0.0
        %678 = vmatpush1.msra.mxu0 0.0
        %679 = vmatprep.subr.mxu0 0.0
        %680 = vmatpush1.msra.mxu0 0.0
        %681 = vmatprep.subr.mxu0 0.0
        %682 = vmatpush1.msra.mxu0 0.0
        %683 = vmatprep.subr.mxu0 0.0
        %684 = vmatpush1.msra.mxu0 0.0
        %685 = vmatprep.subr.mxu0 0.0
        %686 = vmatpush1.msra.mxu0 0.0
        %687 = vmatprep.subr.mxu0 0.0
        %688 = vmatpush1.msra.mxu0 0.0
        %689 = vmatprep.subr.mxu0 0.0
        %690 = vmatpush1.msra.mxu0 0.0
        %691 = vmatprep.subr.mxu0 %v655
        %692 = vmatpush1.msra.mxu0 %v654
        %693 = vmatprep.subr.mxu0 0.0
        %694 = vmatpush2.msra.mxu0 0.0
        %695 = vmatprep.subr.mxu0 0.0
        %696 = vmatpush2.msra.mxu0 0.0
        %697 = vmatprep.subr.mxu0 0.0
        %698 = vmatpush2.msra.mxu0 0.0
        %699 = vmatprep.subr.mxu0 0.0
        %700 = vmatpush2.msra.mxu0 0.0
        %701 = vmatprep.subr.mxu0 0.0
        %702 = vmatpush2.msra.mxu0 0.0
        %703 = vmatprep.subr.mxu0 0.0
        %704 = vmatpush2.msra.mxu0 0.0
        %705 = vmatprep.subr.mxu0 0.0
        %706 = vmatpush2.msra.mxu0 0.0
        %707 = vmatprep.subr.mxu0 0.0
        %708 = vmatpush2.msra.mxu0 0.0
        %709 = vmatprep.subr.mxu0 0.0
        %710 = vmatpush2.msra.mxu0 0.0
        %711 = vmatprep.subr.mxu0 0.0
        %712 = vmatpush2.msra.mxu0 0.0
        %713 = vmatprep.subr.mxu0 0.0
        %714 = vmatpush2.msra.mxu0 0.0
        %715 = vmatprep.subr.mxu0 0.0
        %716 = vmatpush2.msra.mxu0 0.0
        %717 = vmatprep.subr.mxu0 0.0
        %718 = vmatpush2.msra.mxu0 0.0
        %719 = vmatprep.subr.mxu0 0.0
        %720 = vmatpush2.msra.mxu0 0.0
        %721 = vmatprep.subr.mxu0 0.0
        %722 = vmatpush2.msra.mxu0 0.0
        %723 = vmatprep.subr.mxu0 0.0
        %724 = vmatpush2.msra.mxu0 0.0
        %725 = vmatprep.mubr.f32.mxu0 0.0
        %726 = vmatmul.mubr.f32.gmra.mxu0 %v659
        %v727 = vpop.f32.mrf.mxu0
        %v728 = vadd.f32 0.0, %v727
        %v729 = vpop.f32.mrf.mxu0
        %v730 = vadd.f32 0.0, %v729
        %731 = vdwg.mxu0
        %v732 = vadd.f32 %v643, %v728
        %v733 = vadd.f32 %v644, %v730
        %734 = vrot.lane.b32.xlu0 %v260, 18
        %v735 = vpop.permute.xlu0 %734
        %736 = vrot.lane.b32.xlu0 %v261, 18
        %v737 = vpop.permute.xlu0 %736
        %vm738 = vcmask 146432
        %v739 = vsel %vm738, %v735, %v737
        %v743 = vmul.f32 %v262, %v735
        %v744 = vmul.f32 %v263, %v739
        %v745 = vmul.f32 %v267, %v737
        %s746 = scalar_lea.vmem %s1, 40
        %v747 = vld [vmem:[%s746] sm:$0xff]
        %751 = vrot.lane.b32.xlu0 %v743, 110
        %v752 = vpop.permute.xlu0 %751
        %753 = vrot.lane.b32.xlu0 %v744, 110
        %v754 = vpop.permute.xlu0 %753
        %755 = vrot.lane.b32.xlu0 %v745, 110
        %v756 = vpop.permute.xlu0 %755
        %vm757 = vcmask 900096
        %v758 = vsel %vm757, %v752, %v754
        %v759 = vsel %vm757, %v754, %v756
        %v763 = vsel %vm284, %v747, 0
        %765 = vmatprep.subr.mxu0 0.0
        %766 = vmatpush1.msra.mxu0 0.0
        %767 = vmatprep.subr.mxu0 0.0
        %768 = vmatpush1.msra.mxu0 0.0
        %769 = vmatprep.subr.mxu0 0.0
        %770 = vmatpush1.msra.mxu0 0.0
        %771 = vmatprep.subr.mxu0 0.0
        %772 = vmatpush1.msra.mxu0 0.0
        %773 = vmatprep.subr.mxu0 0.0
        %774 = vmatpush1.msra.mxu0 0.0
        %775 = vmatprep.subr.mxu0 0.0
        %776 = vmatpush1.msra.mxu0 0.0
        %777 = vmatprep.subr.mxu0 0.0
        %778 = vmatpush1.msra.mxu0 0.0
        %779 = vmatprep.subr.mxu0 0.0
        %780 = vmatpush1.msra.mxu0 0.0
        %781 = vmatprep.subr.mxu0 0.0
        %782 = vmatpush1.msra.mxu0 0.0
        %783 = vmatprep.subr.mxu0 0.0
        %784 = vmatpush1.msra.mxu0 0.0
        %785 = vmatprep.subr.mxu0 0.0
        %786 = vmatpush1.msra.mxu0 0.0
        %787 = vmatprep.subr.mxu0 0.0
        %788 = vmatpush1.msra.mxu0 0.0
        %789 = vmatprep.subr.mxu0 0.0
        %790 = vmatpush1.msra.mxu0 0.0
        %791 = vmatprep.subr.mxu0 0.0
        %792 = vmatpush1.msra.mxu0 0.0
        %793 = vmatprep.subr.mxu0 0.0
        %794 = vmatpush1.msra.mxu0 0.0
        %795 = vmatprep.subr.mxu0 %v759
        %796 = vmatpush1.msra.mxu0 %v758
        %797 = vmatprep.subr.mxu0 0.0
        %798 = vmatpush2.msra.mxu0 0.0
        %799 = vmatprep.subr.mxu0 0.0
        %800 = vmatpush2.msra.mxu0 0.0
        %801 = vmatprep.subr.mxu0 0.0
        %802 = vmatpush2.msra.mxu0 0.0
        %803 = vmatprep.subr.mxu0 0.0
        %804 = vmatpush2.msra.mxu0 0.0
        %805 = vmatprep.subr.mxu0 0.0
        %806 = vmatpush2.msra.mxu0 0.0
        %807 = vmatprep.subr.mxu0 0.0
        %808 = vmatpush2.msra.mxu0 0.0
        %809 = vmatprep.subr.mxu0 0.0
        %810 = vmatpush2.msra.mxu0 0.0
        %811 = vmatprep.subr.mxu0 0.0
        %812 = vmatpush2.msra.mxu0 0.0
        %813 = vmatprep.subr.mxu0 0.0
        %814 = vmatpush2.msra.mxu0 0.0
        %815 = vmatprep.subr.mxu0 0.0
        %816 = vmatpush2.msra.mxu0 0.0
        %817 = vmatprep.subr.mxu0 0.0
        %818 = vmatpush2.msra.mxu0 0.0
        %819 = vmatprep.subr.mxu0 0.0
        %820 = vmatpush2.msra.mxu0 0.0
        %821 = vmatprep.subr.mxu0 0.0
        %822 = vmatpush2.msra.mxu0 0.0
        %823 = vmatprep.subr.mxu0 0.0
        %824 = vmatpush2.msra.mxu0 0.0
        %825 = vmatprep.subr.mxu0 0.0
        %826 = vmatpush2.msra.mxu0 0.0
        %827 = vmatprep.subr.mxu0 0.0
        %828 = vmatpush2.msra.mxu0 0.0
        %829 = vmatprep.mubr.f32.mxu0 0.0
        %830 = vmatmul.mubr.f32.gmra.mxu0 %v763
        %v831 = vpop.f32.mrf.mxu0
        %v832 = vadd.f32 0.0, %v831
        %v833 = vpop.f32.mrf.mxu0
        %v834 = vadd.f32 0.0, %v833
        %835 = vdwg.mxu0
        %v836 = vadd.f32 %v732, %v832
        %v837 = vadd.f32 %v733, %v834
        %838 = vrot.lane.b32.xlu0 %v254, 32
        %v839 = vpop.permute.xlu0 %838
        %840 = vrot.lane.b32.xlu0 %v255, 32
        %v841 = vpop.permute.xlu0 %840
        %vm842 = vcmask 261120
        %v843 = vsel %vm842, %v839, %v841
        %v847 = vmul.f32 %v262, %v839
        %v848 = vmul.f32 %v263, %v843
        %v849 = vmul.f32 %v267, %v841
        %s850 = scalar_lea.vmem %s1, 48
        %v851 = vld [vmem:[%s850] sm:$0xff]
        %855 = vrot.lane.b32.xlu0 %v847, 96
        %v856 = vpop.permute.xlu0 %855
        %857 = vrot.lane.b32.xlu0 %v848, 96
        %v858 = vpop.permute.xlu0 %857
        %859 = vrot.lane.b32.xlu0 %v849, 96
        %v860 = vpop.permute.xlu0 %859
        %vm861 = vcmask 785408
        %v862 = vsel %vm861, %v856, %v858
        %v863 = vsel %vm861, %v858, %v860
        %v867 = vsel %vm284, %v851, 0
        %869 = vmatprep.subr.mxu0 0.0
        %870 = vmatpush1.msra.mxu0 0.0
        %871 = vmatprep.subr.mxu0 0.0
        %872 = vmatpush1.msra.mxu0 0.0
        %873 = vmatprep.subr.mxu0 0.0
        %874 = vmatpush1.msra.mxu0 0.0
        %875 = vmatprep.subr.mxu0 0.0
        %876 = vmatpush1.msra.mxu0 0.0
        %877 = vmatprep.subr.mxu0 0.0
        %878 = vmatpush1.msra.mxu0 0.0
        %879 = vmatprep.subr.mxu0 0.0
        %880 = vmatpush1.msra.mxu0 0.0
        %881 = vmatprep.subr.mxu0 0.0
        %882 = vmatpush1.msra.mxu0 0.0
        %883 = vmatprep.subr.mxu0 0.0
        %884 = vmatpush1.msra.mxu0 0.0
        %885 = vmatprep.subr.mxu0 0.0
        %886 = vmatpush1.msra.mxu0 0.0
        %887 = vmatprep.subr.mxu0 0.0
        %888 = vmatpush1.msra.mxu0 0.0
        %889 = vmatprep.subr.mxu0 0.0
        %890 = vmatpush1.msra.mxu0 0.0
        %891 = vmatprep.subr.mxu0 0.0
        %892 = vmatpush1.msra.mxu0 0.0
        %893 = vmatprep.subr.mxu0 0.0
        %894 = vmatpush1.msra.mxu0 0.0
        %895 = vmatprep.subr.mxu0 0.0
        %896 = vmatpush1.msra.mxu0 0.0
        %897 = vmatprep.subr.mxu0 0.0
        %898 = vmatpush1.msra.mxu0 0.0
        %899 = vmatprep.subr.mxu0 %v863
        %900 = vmatpush1.msra.mxu0 %v862
        %901 = vmatprep.subr.mxu0 0.0
        %902 = vmatpush2.msra.mxu0 0.0
        %903 = vmatprep.subr.mxu0 0.0
        %904 = vmatpush2.msra.mxu0 0.0
        %905 = vmatprep.subr.mxu0 0.0
        %906 = vmatpush2.msra.mxu0 0.0
        %907 = vmatprep.subr.mxu0 0.0
        %908 = vmatpush2.msra.mxu0 0.0
        %909 = vmatprep.subr.mxu0 0.0
        %910 = vmatpush2.msra.mxu0 0.0
        %911 = vmatprep.subr.mxu0 0.0
        %912 = vmatpush2.msra.mxu0 0.0
        %913 = vmatprep.subr.mxu0 0.0
        %914 = vmatpush2.msra.mxu0 0.0
        %915 = vmatprep.subr.mxu0 0.0
        %916 = vmatpush2.msra.mxu0 0.0
        %917 = vmatprep.subr.mxu0 0.0
        %918 = vmatpush2.msra.mxu0 0.0
        %919 = vmatprep.subr.mxu0 0.0
        %920 = vmatpush2.msra.mxu0 0.0
        %921 = vmatprep.subr.mxu0 0.0
        %922 = vmatpush2.msra.mxu0 0.0
        %923 = vmatprep.subr.mxu0 0.0
        %924 = vmatpush2.msra.mxu0 0.0
        %925 = vmatprep.subr.mxu0 0.0
        %926 = vmatpush2.msra.mxu0 0.0
        %927 = vmatprep.subr.mxu0 0.0
        %928 = vmatpush2.msra.mxu0 0.0
        %929 = vmatprep.subr.mxu0 0.0
        %930 = vmatpush2.msra.mxu0 0.0
        %931 = vmatprep.subr.mxu0 0.0
        %932 = vmatpush2.msra.mxu0 0.0
        %933 = vmatprep.mubr.f32.mxu0 0.0
        %934 = vmatmul.mubr.f32.gmra.mxu0 %v867
        %v935 = vpop.f32.mrf.mxu0
        %v936 = vadd.f32 0.0, %v935
        %v937 = vpop.f32.mrf.mxu0
        %v938 = vadd.f32 0.0, %v937
        %939 = vdwg.mxu0
        %v940 = vadd.f32 %v836, %v936
        %v941 = vadd.f32 %v837, %v938
        %s942 = scalar_lea.vmem %s1, 56
        %v943 = vld [vmem:[%s942] sm:$0xff]
        %944 = vrot.lane.b32.xlu0 %v262, 95
        %v945 = vpop.permute.xlu0 %944
        %946 = vrot.lane.b32.xlu0 %v263, 95
        %v947 = vpop.permute.xlu0 %946
        %948 = vrot.lane.b32.xlu0 %v267, 95
        %v949 = vpop.permute.xlu0 %948
        %vm950 = vcmask 777216
        %v951 = vsel %vm950, %v945, %v947
        %v952 = vsel %vm950, %v947, %v949
        %v956 = vsel %vm284, %v943, 0
        %958 = vmatprep.subr.mxu0 0.0
        %959 = vmatpush1.msra.mxu0 0.0
        %960 = vmatprep.subr.mxu0 0.0
        %961 = vmatpush1.msra.mxu0 0.0
        %962 = vmatprep.subr.mxu0 0.0
        %963 = vmatpush1.msra.mxu0 0.0
        %964 = vmatprep.subr.mxu0 0.0
        %965 = vmatpush1.msra.mxu0 0.0
        %966 = vmatprep.subr.mxu0 0.0
        %967 = vmatpush1.msra.mxu0 0.0
        %968 = vmatprep.subr.mxu0 0.0
        %969 = vmatpush1.msra.mxu0 0.0
        %970 = vmatprep.subr.mxu0 0.0
        %971 = vmatpush1.msra.mxu0 0.0
        %972 = vmatprep.subr.mxu0 0.0
        %973 = vmatpush1.msra.mxu0 0.0
        %974 = vmatprep.subr.mxu0 0.0
        %975 = vmatpush1.msra.mxu0 0.0
        %976 = vmatprep.subr.mxu0 0.0
        %977 = vmatpush1.msra.mxu0 0.0
        %978 = vmatprep.subr.mxu0 0.0
        %979 = vmatpush1.msra.mxu0 0.0
        %980 = vmatprep.subr.mxu0 0.0
        %981 = vmatpush1.msra.mxu0 0.0
        %982 = vmatprep.subr.mxu0 0.0
        %983 = vmatpush1.msra.mxu0 0.0
        %984 = vmatprep.subr.mxu0 0.0
        %985 = vmatpush1.msra.mxu0 0.0
        %986 = vmatprep.subr.mxu0 0.0
        %987 = vmatpush1.msra.mxu0 0.0
        %988 = vmatprep.subr.mxu0 %v952
        %989 = vmatpush1.msra.mxu0 %v951
        %990 = vmatprep.subr.mxu0 0.0
        %991 = vmatpush2.msra.mxu0 0.0
        %992 = vmatprep.subr.mxu0 0.0
        %993 = vmatpush2.msra.mxu0 0.0
        %994 = vmatprep.subr.mxu0 0.0
        %995 = vmatpush2.msra.mxu0 0.0
        %996 = vmatprep.subr.mxu0 0.0
        %997 = vmatpush2.msra.mxu0 0.0
        %998 = vmatprep.subr.mxu0 0.0
        %999 = vmatpush2.msra.mxu0 0.0
        %1000 = vmatprep.subr.mxu0 0.0
        %1001 = vmatpush2.msra.mxu0 0.0
        %1002 = vmatprep.subr.mxu0 0.0
        %1003 = vmatpush2.msra.mxu0 0.0
        %1004 = vmatprep.subr.mxu0 0.0
        %1005 = vmatpush2.msra.mxu0 0.0
        %1006 = vmatprep.subr.mxu0 0.0
        %1007 = vmatpush2.msra.mxu0 0.0
        %1008 = vmatprep.subr.mxu0 0.0
        %1009 = vmatpush2.msra.mxu0 0.0
        %1010 = vmatprep.subr.mxu0 0.0
        %1011 = vmatpush2.msra.mxu0 0.0
        %1012 = vmatprep.subr.mxu0 0.0
        %1013 = vmatpush2.msra.mxu0 0.0
        %1014 = vmatprep.subr.mxu0 0.0
        %1015 = vmatpush2.msra.mxu0 0.0
        %1016 = vmatprep.subr.mxu0 0.0
        %1017 = vmatpush2.msra.mxu0 0.0
        %1018 = vmatprep.subr.mxu0 0.0
        %1019 = vmatpush2.msra.mxu0 0.0
        %1020 = vmatprep.subr.mxu0 0.0
        %1021 = vmatpush2.msra.mxu0 0.0
        %1022 = vmatprep.mubr.f32.mxu0 0.0
        %1023 = vmatmul.mubr.f32.gmra.mxu0 %v956
        %v1024 = vpop.f32.mrf.mxu0
        %v1025 = vadd.f32 0.0, %v1024
        %v1026 = vpop.f32.mrf.mxu0
        %v1027 = vadd.f32 0.0, %v1026
        %1028 = vdwg.mxu0
        %v1029 = vadd.f32 %v940, %v1025
        %v1030 = vadd.f32 %v941, %v1027
        %1031 = vrot.lane.b32.xlu0 %v260, 34
        %v1032 = vpop.permute.xlu0 %1031
        %1033 = vrot.lane.b32.xlu0 %v261, 34
        %v1034 = vpop.permute.xlu0 %1033
        %vm1035 = vcmask 277504
        %v1036 = vsel %vm1035, %v1032, %v1034
        %v1040 = vmul.f32 %v262, %v1032
        %v1041 = vmul.f32 %v263, %v1036
        %v1042 = vmul.f32 %v267, %v1034
        %s1043 = scalar_lea.vmem %s1, 64
        %v1044 = vld [vmem:[%s1043] sm:$0xff]
        %1048 = vrot.lane.b32.xlu0 %v1040, 94
        %v1049 = vpop.permute.xlu0 %1048
        %1050 = vrot.lane.b32.xlu0 %v1041, 94
        %v1051 = vpop.permute.xlu0 %1050
        %1052 = vrot.lane.b32.xlu0 %v1042, 94
        %v1053 = vpop.permute.xlu0 %1052
        %vm1054 = vcmask 769024
        %v1055 = vsel %vm1054, %v1049, %v1051
        %v1056 = vsel %vm1054, %v1051, %v1053
        %v1060 = vsel %vm284, %v1044, 0
        %1062 = vmatprep.subr.mxu0 0.0
        %1063 = vmatpush1.msra.mxu0 0.0
        %1064 = vmatprep.subr.mxu0 0.0
        %1065 = vmatpush1.msra.mxu0 0.0
        %1066 = vmatprep.subr.mxu0 0.0
        %1067 = vmatpush1.msra.mxu0 0.0
        %1068 = vmatprep.subr.mxu0 0.0
        %1069 = vmatpush1.msra.mxu0 0.0
        %1070 = vmatprep.subr.mxu0 0.0
        %1071 = vmatpush1.msra.mxu0 0.0
        %1072 = vmatprep.subr.mxu0 0.0
        %1073 = vmatpush1.msra.mxu0 0.0
        %1074 = vmatprep.subr.mxu0 0.0
        %1075 = vmatpush1.msra.mxu0 0.0
        %1076 = vmatprep.subr.mxu0 0.0
        %1077 = vmatpush1.msra.mxu0 0.0
        %1078 = vmatprep.subr.mxu0 0.0
        %1079 = vmatpush1.msra.mxu0 0.0
        %1080 = vmatprep.subr.mxu0 0.0
        %1081 = vmatpush1.msra.mxu0 0.0
        %1082 = vmatprep.subr.mxu0 0.0
        %1083 = vmatpush1.msra.mxu0 0.0
        %1084 = vmatprep.subr.mxu0 0.0
        %1085 = vmatpush1.msra.mxu0 0.0
        %1086 = vmatprep.subr.mxu0 0.0
        %1087 = vmatpush1.msra.mxu0 0.0
        %1088 = vmatprep.subr.mxu0 0.0
        %1089 = vmatpush1.msra.mxu0 0.0
        %1090 = vmatprep.subr.mxu0 0.0
        %1091 = vmatpush1.msra.mxu0 0.0
        %1092 = vmatprep.subr.mxu0 %v1056
        %1093 = vmatpush1.msra.mxu0 %v1055
        %1094 = vmatprep.subr.mxu0 0.0
        %1095 = vmatpush2.msra.mxu0 0.0
        %1096 = vmatprep.subr.mxu0 0.0
        %1097 = vmatpush2.msra.mxu0 0.0
        %1098 = vmatprep.subr.mxu0 0.0
        %1099 = vmatpush2.msra.mxu0 0.0
        %1100 = vmatprep.subr.mxu0 0.0
        %1101 = vmatpush2.msra.mxu0 0.0
        %1102 = vmatprep.subr.mxu0 0.0
        %1103 = vmatpush2.msra.mxu0 0.0
        %1104 = vmatprep.subr.mxu0 0.0
        %1105 = vmatpush2.msra.mxu0 0.0
        %1106 = vmatprep.subr.mxu0 0.0
        %1107 = vmatpush2.msra.mxu0 0.0
        %1108 = vmatprep.subr.mxu0 0.0
        %1109 = vmatpush2.msra.mxu0 0.0
        %1110 = vmatprep.subr.mxu0 0.0
        %1111 = vmatpush2.msra.mxu0 0.0
        %1112 = vmatprep.subr.mxu0 0.0
        %1113 = vmatpush2.msra.mxu0 0.0
        %1114 = vmatprep.subr.mxu0 0.0
        %1115 = vmatpush2.msra.mxu0 0.0
        %1116 = vmatprep.subr.mxu0 0.0
        %1117 = vmatpush2.msra.mxu0 0.0
        %1118 = vmatprep.subr.mxu0 0.0
        %1119 = vmatpush2.msra.mxu0 0.0
        %1120 = vmatprep.subr.mxu0 0.0
        %1121 = vmatpush2.msra.mxu0 0.0
        %1122 = vmatprep.subr.mxu0 0.0
        %1123 = vmatpush2.msra.mxu0 0.0
        %1124 = vmatprep.subr.mxu0 0.0
        %1125 = vmatpush2.msra.mxu0 0.0
        %1126 = vmatprep.mubr.f32.mxu0 0.0
        %1127 = vmatmul.mubr.f32.gmra.mxu0 %v1060
        %v1128 = vpop.f32.mrf.mxu0
        %v1129 = vadd.f32 0.0, %v1128
        %v1130 = vpop.f32.mrf.mxu0
        %v1131 = vadd.f32 0.0, %v1130
        %1132 = vdwg.mxu0
        %v1133 = vadd.f32 %v1029, %v1129
        %v1134 = vadd.f32 %v1030, %v1131
        %v1135 = vld [vmem:[%s2] sm:$0xff]
        %1137 = vset.pattern.permute.xlu0 0
        %1138 = vperm.xlu0 %1137, %v1135
        %v1139 = vpop.permute.xlu0 %1138
        %v1141 = vadd.f32 %v1133, %v1139
        %v1142 = vadd.f32 %v1134, %v1139
        %v1143 = vadd.f32 %v1141, %v1142
        %1144 = vadd.xlane.f32.xlu0 %v1143
        %v1145 = vpop.xlane.xlu0 %1144
        %v1146 = vrcp.pop 256.0
        %v1147 = vmul.f32 %v1145, %v1146
        %v1148 = vsub.f32 %v1141, %v1147
        %v1149 = vsub.f32 %v1142, %v1147
        %v1150 = vmul.f32 %v1148, %v1148
        %v1151 = vmul.f32 %v1149, %v1149
        %v1152 = vadd.f32 %v1150, %v1151
        %1153 = vadd.xlane.f32.xlu0 %v1152
        %v1154 = vpop.xlane.xlu0 %1153
        %v1155 = vmul.f32 %v1154, %v1146
        %v1156 = vadd.f32 %v1155, 1e-05
        %v1157 = vrsqrt.pop %v1156
        %v1158 = vmul.f32 %v1148, %v1157
        %v1159 = vmul.f32 %v1149, %v1157
        %v1160 = vmax.f32 %v1158, 0.0
        %v1161 = vmax.f32 %v1159, 0.0
        %1162 = vst [vmem:[#allocation2] sm:$0xff] 0.0
        %1163 = vst [vmem:[#allocation2 + $0x8] sm:$0xff] 0.0
        %1164 = vst.msk [vmem:[#allocation2 + $0x10] sm:$0xff] %vm1035, 0.0
        %1167 = vrot.lane.b32.xlu0 %v1160, 17
        %v1168 = vpop.permute.xlu0 %1167
        %1169 = vrot.lane.b32.xlu0 %v1161, 17
        %v1170 = vpop.permute.xlu0 %1169
        %vm1171 = vcmask 138240
        %v1172 = vsel %vm1171, %v1168, %v1170
        %vm1176 = vcmask 1047688
        %1177 = vst.msk [vmem:[#allocation2] sm:$0xff] %vm1176, %v1168
        %1178 = vst [vmem:[#allocation2 + $0x8] sm:$0xff] %v1172
        %1179 = vst.msk [vmem:[#allocation2 + $0x10] sm:$0xff] %vm1171, %v1170
        %v1180 = vld [vmem:[#allocation2] sm:$0xff]
        %v1181 = vld [vmem:[#allocation2 + $0x8] sm:$0xff]
        %v1182 = vmul.f32 %v1180, %v254
        %v1183 = vmul.f32 %v1181, %v255
        %v1184 = vld [vmem:[%s3] sm:$0xff]
        %v1185 = vld [vmem:[#allocation2 + $0x10] sm:$0xff]
        %s1186 = scalar_lea.vmem %s3, 8
        %v1187 = vld [vmem:[%s1186] sm:$0xff]
        %1191 = vrot.lane.b32.xlu0 %v1180, 127
        %v1192 = vpop.permute.xlu0 %1191
        %1193 = vrot.lane.b32.xlu0 %v1181, 127
        %v1194 = vpop.permute.xlu0 %1193
        %1195 = vrot.lane.b32.xlu0 %v1185, 127
        %v1196 = vpop.permute.xlu0 %1195
        %v1197 = vsel %vm279, %v1192, %v1194
        %v1198 = vsel %vm279, %v1194, %v1196
        %v1202 = vsel %vm284, %v1187, 0
        %1204 = vmatprep.subr.mxu0 0.0
        %1205 = vmatpush1.msra.mxu0 0.0
        %1206 = vmatprep.subr.mxu0 0.0
        %1207 = vmatpush1.msra.mxu0 0.0
        %1208 = vmatprep.subr.mxu0 0.0
        %1209 = vmatpush1.msra.mxu0 0.0
        %1210 = vmatprep.subr.mxu0 0.0
        %1211 = vmatpush1.msra.mxu0 0.0
        %1212 = vmatprep.subr.mxu0 0.0
        %1213 = vmatpush1.msra.mxu0 0.0
        %1214 = vmatprep.subr.mxu0 0.0
        %1215 = vmatpush1.msra.mxu0 0.0
        %1216 = vmatprep.subr.mxu0 0.0
        %1217 = vmatpush1.msra.mxu0 0.0
        %1218 = vmatprep.subr.mxu0 0.0
        %1219 = vmatpush1.msra.mxu0 0.0
        %1220 = vmatprep.subr.mxu0 0.0
        %1221 = vmatpush1.msra.mxu0 0.0
        %1222 = vmatprep.subr.mxu0 0.0
        %1223 = vmatpush1.msra.mxu0 0.0
        %1224 = vmatprep.subr.mxu0 0.0
        %1225 = vmatpush1.msra.mxu0 0.0
        %1226 = vmatprep.subr.mxu0 0.0
        %1227 = vmatpush1.msra.mxu0 0.0
        %1228 = vmatprep.subr.mxu0 0.0
        %1229 = vmatpush1.msra.mxu0 0.0
        %1230 = vmatprep.subr.mxu0 0.0
        %1231 = vmatpush1.msra.mxu0 0.0
        %1232 = vmatprep.subr.mxu0 0.0
        %1233 = vmatpush1.msra.mxu0 0.0
        %1234 = vmatprep.subr.mxu0 %v1198
        %1235 = vmatpush1.msra.mxu0 %v1197
        %1236 = vmatprep.subr.mxu0 0.0
        %1237 = vmatpush2.msra.mxu0 0.0
        %1238 = vmatprep.subr.mxu0 0.0
        %1239 = vmatpush2.msra.mxu0 0.0
        %1240 = vmatprep.subr.mxu0 0.0
        %1241 = vmatpush2.msra.mxu0 0.0
        %1242 = vmatprep.subr.mxu0 0.0
        %1243 = vmatpush2.msra.mxu0 0.0
        %1244 = vmatprep.subr.mxu0 0.0
        %1245 = vmatpush2.msra.mxu0 0.0
        %1246 = vmatprep.subr.mxu0 0.0
        %1247 = vmatpush2.msra.mxu0 0.0
        %1248 = vmatprep.subr.mxu0 0.0
        %1249 = vmatpush2.msra.mxu0 0.0
        %1250 = vmatprep.subr.mxu0 0.0
        %1251 = vmatpush2.msra.mxu0 0.0
        %1252 = vmatprep.subr.mxu0 0.0
        %1253 = vmatpush2.msra.mxu0 0.0
        %1254 = vmatprep.subr.mxu0 0.0
        %1255 = vmatpush2.msra.mxu0 0.0
        %1256 = vmatprep.subr.mxu0 0.0
        %1257 = vmatpush2.msra.mxu0 0.0
        %1258 = vmatprep.subr.mxu0 0.0
        %1259 = vmatpush2.msra.mxu0 0.0
        %1260 = vmatprep.subr.mxu0 0.0
        %1261 = vmatpush2.msra.mxu0 0.0
        %1262 = vmatprep.subr.mxu0 0.0
        %1263 = vmatpush2.msra.mxu0 0.0
        %1264 = vmatprep.subr.mxu0 0.0
        %1265 = vmatpush2.msra.mxu0 0.0
        %1266 = vmatprep.subr.mxu0 0.0
        %1267 = vmatpush2.msra.mxu0 0.0
        %1268 = vmatprep.mubr.f32.mxu0 0.0
        %1269 = vmatmul.mubr.f32.gmra.mxu0 %v1202
        %v1270 = vpop.f32.mrf.mxu0
        %v1271 = vadd.f32 0.0, %v1270
        %v1272 = vpop.f32.mrf.mxu0
        %v1273 = vadd.f32 0.0, %v1272
        %1274 = vdwg.mxu0
        %v1276 = vsel %vm284, %v1184, 0
        %1278 = vmatprep.subr.mxu0 0.0
        %1279 = vmatpush1.msra.mxu0 0.0
        %1280 = vmatprep.subr.mxu0 0.0
        %1281 = vmatpush1.msra.mxu0 0.0
        %1282 = vmatprep.subr.mxu0 0.0
        %1283 = vmatpush1.msra.mxu0 0.0
        %1284 = vmatprep.subr.mxu0 0.0
        %1285 = vmatpush1.msra.mxu0 0.0
        %1286 = vmatprep.subr.mxu0 0.0
        %1287 = vmatpush1.msra.mxu0 0.0
        %1288 = vmatprep.subr.mxu0 0.0
        %1289 = vmatpush1.msra.mxu0 0.0
        %1290 = vmatprep.subr.mxu0 0.0
        %1291 = vmatpush1.msra.mxu0 0.0
        %1292 = vmatprep.subr.mxu0 0.0
        %1293 = vmatpush1.msra.mxu0 0.0
        %1294 = vmatprep.subr.mxu0 0.0
        %1295 = vmatpush1.msra.mxu0 0.0
        %1296 = vmatprep.subr.mxu0 0.0
        %1297 = vmatpush1.msra.mxu0 0.0
        %1298 = vmatprep.subr.mxu0 0.0
        %1299 = vmatpush1.msra.mxu0 0.0
        %1300 = vmatprep.subr.mxu0 0.0
        %1301 = vmatpush1.msra.mxu0 0.0
        %1302 = vmatprep.subr.mxu0 0.0
        %1303 = vmatpush1.msra.mxu0 0.0
        %1304 = vmatprep.subr.mxu0 0.0
        %1305 = vmatpush1.msra.mxu0 0.0
        %1306 = vmatprep.subr.mxu0 0.0
        %1307 = vmatpush1.msra.mxu0 0.0
        %1308 = vmatprep.subr.mxu0 %v1183
        %1309 = vmatpush1.msra.mxu0 %v1182
        %1310 = vmatprep.subr.mxu0 0.0
        %1311 = vmatpush2.msra.mxu0 0.0
        %1312 = vmatprep.subr.mxu0 0.0
        %1313 = vmatpush2.msra.mxu0 0.0
        %1314 = vmatprep.subr.mxu0 0.0
        %1315 = vmatpush2.msra.mxu0 0.0
        %1316 = vmatprep.subr.mxu0 0.0
        %1317 = vmatpush2.msra.mxu0 0.0
        %1318 = vmatprep.subr.mxu0 0.0
        %1319 = vmatpush2.msra.mxu0 0.0
        %1320 = vmatprep.subr.mxu0 0.0
        %1321 = vmatpush2.msra.mxu0 0.0
        %1322 = vmatprep.subr.mxu0 0.0
        %1323 = vmatpush2.msra.mxu0 0.0
        %1324 = vmatprep.subr.mxu0 0.0
        %1325 = vmatpush2.msra.mxu0 0.0
        %1326 = vmatprep.subr.mxu0 0.0
        %1327 = vmatpush2.msra.mxu0 0.0
        %1328 = vmatprep.subr.mxu0 0.0
        %1329 = vmatpush2.msra.mxu0 0.0
        %1330 = vmatprep.subr.mxu0 0.0
        %1331 = vmatpush2.msra.mxu0 0.0
        %1332 = vmatprep.subr.mxu0 0.0
        %1333 = vmatpush2.msra.mxu0 0.0
        %1334 = vmatprep.subr.mxu0 0.0
        %1335 = vmatpush2.msra.mxu0 0.0
        %1336 = vmatprep.subr.mxu0 0.0
        %1337 = vmatpush2.msra.mxu0 0.0
        %1338 = vmatprep.subr.mxu0 0.0
        %1339 = vmatpush2.msra.mxu0 0.0
        %1340 = vmatprep.subr.mxu0 0.0
        %1341 = vmatpush2.msra.mxu0 0.0
        %1342 = vmatprep.mubr.f32.mxu0 0.0
        %1343 = vmatmul.mubr.f32.gmra.mxu0 %v1276
        %v1344 = vpop.f32.mrf.mxu0
        %v1345 = vadd.f32 %v1271, %v1344
        %v1346 = vpop.f32.mrf.mxu0
        %v1347 = vadd.f32 %v1273, %v1346
        %1348 = vdwg.mxu0
        %v1349 = vmul.f32 %v1180, %v436
        %v1350 = vmul.f32 %v1181, %v440
        %v1351 = vmul.f32 %v1185, %v438
        %s1352 = scalar_lea.vmem %s3, 16
        %v1353 = vld [vmem:[%s1352] sm:$0xff]
        %1357 = vrot.lane.b32.xlu0 %v1349, 126
        %v1358 = vpop.permute.xlu0 %1357
        %1359 = vrot.lane.b32.xlu0 %v1350, 126
        %v1360 = vpop.permute.xlu0 %1359
        %1361 = vrot.lane.b32.xlu0 %v1351, 126
        %v1362 = vpop.permute.xlu0 %1361
        %v1363 = vsel %vm458, %v1358, %v1360
        %v1364 = vsel %vm458, %v1360, %v1362
        %v1368 = vsel %vm284, %v1353, 0
        %1370 = vmatprep.subr.mxu0 0.0
        %1371 = vmatpush1.msra.mxu0 0.0
        %1372 = vmatprep.subr.mxu0 0.0
        %1373 = vmatpush1.msra.mxu0 0.0
        %1374 = vmatprep.subr.mxu0 0.0
        %1375 = vmatpush1.msra.mxu0 0.0
        %1376 = vmatprep.subr.mxu0 0.0
        %1377 = vmatpush1.msra.mxu0 0.0
        %1378 = vmatprep.subr.mxu0 0.0
        %1379 = vmatpush1.msra.mxu0 0.0
        %1380 = vmatprep.subr.mxu0 0.0
        %1381 = vmatpush1.msra.mxu0 0.0
        %1382 = vmatprep.subr.mxu0 0.0
        %1383 = vmatpush1.msra.mxu0 0.0
        %1384 = vmatprep.subr.mxu0 0.0
        %1385 = vmatpush1.msra.mxu0 0.0
        %1386 = vmatprep.subr.mxu0 0.0
        %1387 = vmatpush1.msra.mxu0 0.0
        %1388 = vmatprep.subr.mxu0 0.0
        %1389 = vmatpush1.msra.mxu0 0.0
        %1390 = vmatprep.subr.mxu0 0.0
        %1391 = vmatpush1.msra.mxu0 0.0
        %1392 = vmatprep.subr.mxu0 0.0
        %1393 = vmatpush1.msra.mxu0 0.0
        %1394 = vmatprep.subr.mxu0 0.0
        %1395 = vmatpush1.msra.mxu0 0.0
        %1396 = vmatprep.subr.mxu0 0.0
        %1397 = vmatpush1.msra.mxu0 0.0
        %1398 = vmatprep.subr.mxu0 0.0
        %1399 = vmatpush1.msra.mxu0 0.0
        %1400 = vmatprep.subr.mxu0 %v1364
        %1401 = vmatpush1.msra.mxu0 %v1363
        %1402 = vmatprep.subr.mxu0 0.0
        %1403 = vmatpush2.msra.mxu0 0.0
        %1404 = vmatprep.subr.mxu0 0.0
        %1405 = vmatpush2.msra.mxu0 0.0
        %1406 = vmatprep.subr.mxu0 0.0
        %1407 = vmatpush2.msra.mxu0 0.0
        %1408 = vmatprep.subr.mxu0 0.0
        %1409 = vmatpush2.msra.mxu0 0.0
        %1410 = vmatprep.subr.mxu0 0.0
        %1411 = vmatpush2.msra.mxu0 0.0
        %1412 = vmatprep.subr.mxu0 0.0
        %1413 = vmatpush2.msra.mxu0 0.0
        %1414 = vmatprep.subr.mxu0 0.0
        %1415 = vmatpush2.msra.mxu0 0.0
        %1416 = vmatprep.subr.mxu0 0.0
        %1417 = vmatpush2.msra.mxu0 0.0
        %1418 = vmatprep.subr.mxu0 0.0
        %1419 = vmatpush2.msra.mxu0 0.0
        %1420 = vmatprep.subr.mxu0 0.0
        %1421 = vmatpush2.msra.mxu0 0.0
        %1422 = vmatprep.subr.mxu0 0.0
        %1423 = vmatpush2.msra.mxu0 0.0
        %1424 = vmatprep.subr.mxu0 0.0
        %1425 = vmatpush2.msra.mxu0 0.0
        %1426 = vmatprep.subr.mxu0 0.0
        %1427 = vmatpush2.msra.mxu0 0.0
        %1428 = vmatprep.subr.mxu0 0.0
        %1429 = vmatpush2.msra.mxu0 0.0
        %1430 = vmatprep.subr.mxu0 0.0
        %1431 = vmatpush2.msra.mxu0 0.0
        %1432 = vmatprep.subr.mxu0 0.0
        %1433 = vmatpush2.msra.mxu0 0.0
        %1434 = vmatprep.mubr.f32.mxu0 0.0
        %1435 = vmatmul.mubr.f32.gmra.mxu0 %v1368
        %v1436 = vpop.f32.mrf.mxu0
        %v1437 = vadd.f32 0.0, %v1436
        %v1438 = vpop.f32.mrf.mxu0
        %v1439 = vadd.f32 0.0, %v1438
        %1440 = vdwg.mxu0
        %v1441 = vadd.f32 %v1345, %v1437
        %v1442 = vadd.f32 %v1347, %v1439
        %v1443 = vmul.f32 %v1180, %v542
        %v1444 = vmul.f32 %v1181, %v546
        %v1445 = vmul.f32 %v1185, %v544
        %s1446 = scalar_lea.vmem %s3, 24
        %v1447 = vld [vmem:[%s1446] sm:$0xff]
        %1451 = vrot.lane.b32.xlu0 %v1443, 112
        %v1452 = vpop.permute.xlu0 %1451
        %1453 = vrot.lane.b32.xlu0 %v1444, 112
        %v1454 = vpop.permute.xlu0 %1453
        %1455 = vrot.lane.b32.xlu0 %v1445, 112
        %v1456 = vpop.permute.xlu0 %1455
        %v1457 = vsel %vm564, %v1452, %v1454
        %v1458 = vsel %vm564, %v1454, %v1456
        %v1462 = vsel %vm284, %v1447, 0
        %1464 = vmatprep.subr.mxu0 0.0
        %1465 = vmatpush1.msra.mxu0 0.0
        %1466 = vmatprep.subr.mxu0 0.0
        %1467 = vmatpush1.msra.mxu0 0.0
        %1468 = vmatprep.subr.mxu0 0.0
        %1469 = vmatpush1.msra.mxu0 0.0
        %1470 = vmatprep.subr.mxu0 0.0
        %1471 = vmatpush1.msra.mxu0 0.0
        %1472 = vmatprep.subr.mxu0 0.0
        %1473 = vmatpush1.msra.mxu0 0.0
        %1474 = vmatprep.subr.mxu0 0.0
        %1475 = vmatpush1.msra.mxu0 0.0
        %1476 = vmatprep.subr.mxu0 0.0
        %1477 = vmatpush1.msra.mxu0 0.0
        %1478 = vmatprep.subr.mxu0 0.0
        %1479 = vmatpush1.msra.mxu0 0.0
        %1480 = vmatprep.subr.mxu0 0.0
        %1481 = vmatpush1.msra.mxu0 0.0
        %1482 = vmatprep.subr.mxu0 0.0
        %1483 = vmatpush1.msra.mxu0 0.0
        %1484 = vmatprep.subr.mxu0 0.0
        %1485 = vmatpush1.msra.mxu0 0.0
        %1486 = vmatprep.subr.mxu0 0.0
        %1487 = vmatpush1.msra.mxu0 0.0
        %1488 = vmatprep.subr.mxu0 0.0
        %1489 = vmatpush1.msra.mxu0 0.0
        %1490 = vmatprep.subr.mxu0 0.0
        %1491 = vmatpush1.msra.mxu0 0.0
        %1492 = vmatprep.subr.mxu0 0.0
        %1493 = vmatpush1.msra.mxu0 0.0
        %1494 = vmatprep.subr.mxu0 %v1458
        %1495 = vmatpush1.msra.mxu0 %v1457
        %1496 = vmatprep.subr.mxu0 0.0
        %1497 = vmatpush2.msra.mxu0 0.0
        %1498 = vmatprep.subr.mxu0 0.0
        %1499 = vmatpush2.msra.mxu0 0.0
        %1500 = vmatprep.subr.mxu0 0.0
        %1501 = vmatpush2.msra.mxu0 0.0
        %1502 = vmatprep.subr.mxu0 0.0
        %1503 = vmatpush2.msra.mxu0 0.0
        %1504 = vmatprep.subr.mxu0 0.0
        %1505 = vmatpush2.msra.mxu0 0.0
        %1506 = vmatprep.subr.mxu0 0.0
        %1507 = vmatpush2.msra.mxu0 0.0
        %1508 = vmatprep.subr.mxu0 0.0
        %1509 = vmatpush2.msra.mxu0 0.0
        %1510 = vmatprep.subr.mxu0 0.0
        %1511 = vmatpush2.msra.mxu0 0.0
        %1512 = vmatprep.subr.mxu0 0.0
        %1513 = vmatpush2.msra.mxu0 0.0
        %1514 = vmatprep.subr.mxu0 0.0
        %1515 = vmatpush2.msra.mxu0 0.0
        %1516 = vmatprep.subr.mxu0 0.0
        %1517 = vmatpush2.msra.mxu0 0.0
        %1518 = vmatprep.subr.mxu0 0.0
        %1519 = vmatpush2.msra.mxu0 0.0
        %1520 = vmatprep.subr.mxu0 0.0
        %1521 = vmatpush2.msra.mxu0 0.0
        %1522 = vmatprep.subr.mxu0 0.0
        %1523 = vmatpush2.msra.mxu0 0.0
        %1524 = vmatprep.subr.mxu0 0.0
        %1525 = vmatpush2.msra.mxu0 0.0
        %1526 = vmatprep.subr.mxu0 0.0
        %1527 = vmatpush2.msra.mxu0 0.0
        %1528 = vmatprep.mubr.f32.mxu0 0.0
        %1529 = vmatmul.mubr.f32.gmra.mxu0 %v1462
        %v1530 = vpop.f32.mrf.mxu0
        %v1531 = vadd.f32 0.0, %v1530
        %v1532 = vpop.f32.mrf.mxu0
        %v1533 = vadd.f32 0.0, %v1532
        %1534 = vdwg.mxu0
        %v1535 = vadd.f32 %v1441, %v1531
        %v1536 = vadd.f32 %v1442, %v1533
        %s1537 = scalar_lea.vmem %s3, 32
        %v1538 = vld [vmem:[%s1537] sm:$0xff]
        %1539 = vrot.lane.b32.xlu0 %v1180, 111
        %v1540 = vpop.permute.xlu0 %1539
        %1541 = vrot.lane.b32.xlu0 %v1181, 111
        %v1542 = vpop.permute.xlu0 %1541
        %1543 = vrot.lane.b32.xlu0 %v1185, 111
        %v1544 = vpop.permute.xlu0 %1543
        %v1545 = vsel %vm653, %v1540, %v1542
        %v1546 = vsel %vm653, %v1542, %v1544
        %v1550 = vsel %vm284, %v1538, 0
        %1552 = vmatprep.subr.mxu0 0.0
        %1553 = vmatpush1.msra.mxu0 0.0
        %1554 = vmatprep.subr.mxu0 0.0
        %1555 = vmatpush1.msra.mxu0 0.0
        %1556 = vmatprep.subr.mxu0 0.0
        %1557 = vmatpush1.msra.mxu0 0.0
        %1558 = vmatprep.subr.mxu0 0.0
        %1559 = vmatpush1.msra.mxu0 0.0
        %1560 = vmatprep.subr.mxu0 0.0
        %1561 = vmatpush1.msra.mxu0 0.0
        %1562 = vmatprep.subr.mxu0 0.0
        %1563 = vmatpush1.msra.mxu0 0.0
        %1564 = vmatprep.subr.mxu0 0.0
        %1565 = vmatpush1.msra.mxu0 0.0
        %1566 = vmatprep.subr.mxu0 0.0
        %1567 = vmatpush1.msra.mxu0 0.0
        %1568 = vmatprep.subr.mxu0 0.0
        %1569 = vmatpush1.msra.mxu0 0.0
        %1570 = vmatprep.subr.mxu0 0.0
        %1571 = vmatpush1.msra.mxu0 0.0
        %1572 = vmatprep.subr.mxu0 0.0
        %1573 = vmatpush1.msra.mxu0 0.0
        %1574 = vmatprep.subr.mxu0 0.0
        %1575 = vmatpush1.msra.mxu0 0.0
        %1576 = vmatprep.subr.mxu0 0.0
        %1577 = vmatpush1.msra.mxu0 0.0
        %1578 = vmatprep.subr.mxu0 0.0
        %1579 = vmatpush1.msra.mxu0 0.0
        %1580 = vmatprep.subr.mxu0 0.0
        %1581 = vmatpush1.msra.mxu0 0.0
        %1582 = vmatprep.subr.mxu0 %v1546
        %1583 = vmatpush1.msra.mxu0 %v1545
        %1584 = vmatprep.subr.mxu0 0.0
        %1585 = vmatpush2.msra.mxu0 0.0
        %1586 = vmatprep.subr.mxu0 0.0
        %1587 = vmatpush2.msra.mxu0 0.0
        %1588 = vmatprep.subr.mxu0 0.0
        %1589 = vmatpush2.msra.mxu0 0.0
        %1590 = vmatprep.subr.mxu0 0.0
        %1591 = vmatpush2.msra.mxu0 0.0
        %1592 = vmatprep.subr.mxu0 0.0
        %1593 = vmatpush2.msra.mxu0 0.0
        %1594 = vmatprep.subr.mxu0 0.0
        %1595 = vmatpush2.msra.mxu0 0.0
        %1596 = vmatprep.subr.mxu0 0.0
        %1597 = vmatpush2.msra.mxu0 0.0
        %1598 = vmatprep.subr.mxu0 0.0
        %1599 = vmatpush2.msra.mxu0 0.0
        %1600 = vmatprep.subr.mxu0 0.0
        %1601 = vmatpush2.msra.mxu0 0.0
        %1602 = vmatprep.subr.mxu0 0.0
        %1603 = vmatpush2.msra.mxu0 0.0
        %1604 = vmatprep.subr.mxu0 0.0
        %1605 = vmatpush2.msra.mxu0 0.0
        %1606 = vmatprep.subr.mxu0 0.0
        %1607 = vmatpush2.msra.mxu0 0.0
        %1608 = vmatprep.subr.mxu0 0.0
        %1609 = vmatpush2.msra.mxu0 0.0
        %1610 = vmatprep.subr.mxu0 0.0
        %1611 = vmatpush2.msra.mxu0 0.0
        %1612 = vmatprep.subr.mxu0 0.0
        %1613 = vmatpush2.msra.mxu0 0.0
        %1614 = vmatprep.subr.mxu0 0.0
        %1615 = vmatpush2.msra.mxu0 0.0
        %1616 = vmatprep.mubr.f32.mxu0 0.0
        %1617 = vmatmul.mubr.f32.gmra.mxu0 %v1550
        %v1618 = vpop.f32.mrf.mxu0
        %v1619 = vadd.f32 0.0, %v1618
        %v1620 = vpop.f32.mrf.mxu0
        %v1621 = vadd.f32 0.0, %v1620
        %1622 = vdwg.mxu0
        %v1623 = vadd.f32 %v1535, %v1619
        %v1624 = vadd.f32 %v1536, %v1621
        %v1625 = vmul.f32 %v1180, %v735
        %v1626 = vmul.f32 %v1181, %v739
        %v1627 = vmul.f32 %v1185, %v737
        %s1628 = scalar_lea.vmem %s3, 40
        %v1629 = vld [vmem:[%s1628] sm:$0xff]
        %1633 = vrot.lane.b32.xlu0 %v1625, 110
        %v1634 = vpop.permute.xlu0 %1633
        %1635 = vrot.lane.b32.xlu0 %v1626, 110
        %v1636 = vpop.permute.xlu0 %1635
        %1637 = vrot.lane.b32.xlu0 %v1627, 110
        %v1638 = vpop.permute.xlu0 %1637
        %v1639 = vsel %vm757, %v1634, %v1636
        %v1640 = vsel %vm757, %v1636, %v1638
        %v1644 = vsel %vm284, %v1629, 0
        %1646 = vmatprep.subr.mxu0 0.0
        %1647 = vmatpush1.msra.mxu0 0.0
        %1648 = vmatprep.subr.mxu0 0.0
        %1649 = vmatpush1.msra.mxu0 0.0
        %1650 = vmatprep.subr.mxu0 0.0
        %1651 = vmatpush1.msra.mxu0 0.0
        %1652 = vmatprep.subr.mxu0 0.0
        %1653 = vmatpush1.msra.mxu0 0.0
        %1654 = vmatprep.subr.mxu0 0.0
        %1655 = vmatpush1.msra.mxu0 0.0
        %1656 = vmatprep.subr.mxu0 0.0
        %1657 = vmatpush1.msra.mxu0 0.0
        %1658 = vmatprep.subr.mxu0 0.0
        %1659 = vmatpush1.msra.mxu0 0.0
        %1660 = vmatprep.subr.mxu0 0.0
        %1661 = vmatpush1.msra.mxu0 0.0
        %1662 = vmatprep.subr.mxu0 0.0
        %1663 = vmatpush1.msra.mxu0 0.0
        %1664 = vmatprep.subr.mxu0 0.0
        %1665 = vmatpush1.msra.mxu0 0.0
        %1666 = vmatprep.subr.mxu0 0.0
        %1667 = vmatpush1.msra.mxu0 0.0
        %1668 = vmatprep.subr.mxu0 0.0
        %1669 = vmatpush1.msra.mxu0 0.0
        %1670 = vmatprep.subr.mxu0 0.0
        %1671 = vmatpush1.msra.mxu0 0.0
        %1672 = vmatprep.subr.mxu0 0.0
        %1673 = vmatpush1.msra.mxu0 0.0
        %1674 = vmatprep.subr.mxu0 0.0
        %1675 = vmatpush1.msra.mxu0 0.0
        %1676 = vmatprep.subr.mxu0 %v1640
        %1677 = vmatpush1.msra.mxu0 %v1639
        %1678 = vmatprep.subr.mxu0 0.0
        %1679 = vmatpush2.msra.mxu0 0.0
        %1680 = vmatprep.subr.mxu0 0.0
        %1681 = vmatpush2.msra.mxu0 0.0
        %1682 = vmatprep.subr.mxu0 0.0
        %1683 = vmatpush2.msra.mxu0 0.0
        %1684 = vmatprep.subr.mxu0 0.0
        %1685 = vmatpush2.msra.mxu0 0.0
        %1686 = vmatprep.subr.mxu0 0.0
        %1687 = vmatpush2.msra.mxu0 0.0
        %1688 = vmatprep.subr.mxu0 0.0
        %1689 = vmatpush2.msra.mxu0 0.0
        %1690 = vmatprep.subr.mxu0 0.0
        %1691 = vmatpush2.msra.mxu0 0.0
        %1692 = vmatprep.subr.mxu0 0.0
        %1693 = vmatpush2.msra.mxu0 0.0
        %1694 = vmatprep.subr.mxu0 0.0
        %1695 = vmatpush2.msra.mxu0 0.0
        %1696 = vmatprep.subr.mxu0 0.0
        %1697 = vmatpush2.msra.mxu0 0.0
        %1698 = vmatprep.subr.mxu0 0.0
        %1699 = vmatpush2.msra.mxu0 0.0
        %1700 = vmatprep.subr.mxu0 0.0
        %1701 = vmatpush2.msra.mxu0 0.0
        %1702 = vmatprep.subr.mxu0 0.0
        %1703 = vmatpush2.msra.mxu0 0.0
        %1704 = vmatprep.subr.mxu0 0.0
        %1705 = vmatpush2.msra.mxu0 0.0
        %1706 = vmatprep.subr.mxu0 0.0
        %1707 = vmatpush2.msra.mxu0 0.0
        %1708 = vmatprep.subr.mxu0 0.0
        %1709 = vmatpush2.msra.mxu0 0.0
        %1710 = vmatprep.mubr.f32.mxu0 0.0
        %1711 = vmatmul.mubr.f32.gmra.mxu0 %v1644
        %v1712 = vpop.f32.mrf.mxu0
        %v1713 = vadd.f32 0.0, %v1712
        %v1714 = vpop.f32.mrf.mxu0
        %v1715 = vadd.f32 0.0, %v1714
        %1716 = vdwg.mxu0
        %v1717 = vadd.f32 %v1623, %v1713
        %v1718 = vadd.f32 %v1624, %v1715
        %v1719 = vmul.f32 %v1180, %v839
        %v1720 = vmul.f32 %v1181, %v843
        %v1721 = vmul.f32 %v1185, %v841
        %s1722 = scalar_lea.vmem %s3, 48
        %v1723 = vld [vmem:[%s1722] sm:$0xff]
        %1727 = vrot.lane.b32.xlu0 %v1719, 96
        %v1728 = vpop.permute.xlu0 %1727
        %1729 = vrot.lane.b32.xlu0 %v1720, 96
        %v1730 = vpop.permute.xlu0 %1729
        %1731 = vrot.lane.b32.xlu0 %v1721, 96
        %v1732 = vpop.permute.xlu0 %1731
        %v1733 = vsel %vm861, %v1728, %v1730
        %v1734 = vsel %vm861, %v1730, %v1732
        %v1738 = vsel %vm284, %v1723, 0
        %1740 = vmatprep.subr.mxu0 0.0
        %1741 = vmatpush1.msra.mxu0 0.0
        %1742 = vmatprep.subr.mxu0 0.0
        %1743 = vmatpush1.msra.mxu0 0.0
        %1744 = vmatprep.subr.mxu0 0.0
        %1745 = vmatpush1.msra.mxu0 0.0
        %1746 = vmatprep.subr.mxu0 0.0
        %1747 = vmatpush1.msra.mxu0 0.0
        %1748 = vmatprep.subr.mxu0 0.0
        %1749 = vmatpush1.msra.mxu0 0.0
        %1750 = vmatprep.subr.mxu0 0.0
        %1751 = vmatpush1.msra.mxu0 0.0
        %1752 = vmatprep.subr.mxu0 0.0
        %1753 = vmatpush1.msra.mxu0 0.0
        %1754 = vmatprep.subr.mxu0 0.0
        %1755 = vmatpush1.msra.mxu0 0.0
        %1756 = vmatprep.subr.mxu0 0.0
        %1757 = vmatpush1.msra.mxu0 0.0
        %1758 = vmatprep.subr.mxu0 0.0
        %1759 = vmatpush1.msra.mxu0 0.0
        %1760 = vmatprep.subr.mxu0 0.0
        %1761 = vmatpush1.msra.mxu0 0.0
        %1762 = vmatprep.subr.mxu0 0.0
        %1763 = vmatpush1.msra.mxu0 0.0
        %1764 = vmatprep.subr.mxu0 0.0
        %1765 = vmatpush1.msra.mxu0 0.0
        %1766 = vmatprep.subr.mxu0 0.0
        %1767 = vmatpush1.msra.mxu0 0.0
        %1768 = vmatprep.subr.mxu0 0.0
        %1769 = vmatpush1.msra.mxu0 0.0
        %1770 = vmatprep.subr.mxu0 %v1734
        %1771 = vmatpush1.msra.mxu0 %v1733
        %1772 = vmatprep.subr.mxu0 0.0
        %1773 = vmatpush2.msra.mxu0 0.0
        %1774 = vmatprep.subr.mxu0 0.0
        %1775 = vmatpush2.msra.mxu0 0.0
        %1776 = vmatprep.subr.mxu0 0.0
        %1777 = vmatpush2.msra.mxu0 0.0
        %1778 = vmatprep.subr.mxu0 0.0
        %1779 = vmatpush2.msra.mxu0 0.0
        %1780 = vmatprep.subr.mxu0 0.0
        %1781 = vmatpush2.msra.mxu0 0.0
        %1782 = vmatprep.subr.mxu0 0.0
        %1783 = vmatpush2.msra.mxu0 0.0
        %1784 = vmatprep.subr.mxu0 0.0
        %1785 = vmatpush2.msra.mxu0 0.0
        %1786 = vmatprep.subr.mxu0 0.0
        %1787 = vmatpush2.msra.mxu0 0.0
        %1788 = vmatprep.subr.mxu0 0.0
        %1789 = vmatpush2.msra.mxu0 0.0
        %1790 = vmatprep.subr.mxu0 0.0
        %1791 = vmatpush2.msra.mxu0 0.0
        %1792 = vmatprep.subr.mxu0 0.0
        %1793 = vmatpush2.msra.mxu0 0.0
        %1794 = vmatprep.subr.mxu0 0.0
        %1795 = vmatpush2.msra.mxu0 0.0
        %1796 = vmatprep.subr.mxu0 0.0
        %1797 = vmatpush2.msra.mxu0 0.0
        %1798 = vmatprep.subr.mxu0 0.0
        %1799 = vmatpush2.msra.mxu0 0.0
        %1800 = vmatprep.subr.mxu0 0.0
        %1801 = vmatpush2.msra.mxu0 0.0
        %1802 = vmatprep.subr.mxu0 0.0
        %1803 = vmatpush2.msra.mxu0 0.0
        %1804 = vmatprep.mubr.f32.mxu0 0.0
        %1805 = vmatmul.mubr.f32.gmra.mxu0 %v1738
        %v1806 = vpop.f32.mrf.mxu0
        %v1807 = vadd.f32 0.0, %v1806
        %v1808 = vpop.f32.mrf.mxu0
        %v1809 = vadd.f32 0.0, %v1808
        %1810 = vdwg.mxu0
        %v1811 = vadd.f32 %v1717, %v1807
        %v1812 = vadd.f32 %v1718, %v1809
        %s1813 = scalar_lea.vmem %s3, 56
        %v1814 = vld [vmem:[%s1813] sm:$0xff]
        %1815 = vrot.lane.b32.xlu0 %v1180, 95
        %v1816 = vpop.permute.xlu0 %1815
        %1817 = vrot.lane.b32.xlu0 %v1181, 95
        %v1818 = vpop.permute.xlu0 %1817
        %1819 = vrot.lane.b32.xlu0 %v1185, 95
        %v1820 = vpop.permute.xlu0 %1819
        %v1821 = vsel %vm950, %v1816, %v1818
        %v1822 = vsel %vm950, %v1818, %v1820
        %v1826 = vsel %vm284, %v1814, 0
        %1828 = vmatprep.subr.mxu0 0.0
        %1829 = vmatpush1.msra.mxu0 0.0
        %1830 = vmatprep.subr.mxu0 0.0
        %1831 = vmatpush1.msra.mxu0 0.0
        %1832 = vmatprep.subr.mxu0 0.0
        %1833 = vmatpush1.msra.mxu0 0.0
        %1834 = vmatprep.subr.mxu0 0.0
        %1835 = vmatpush1.msra.mxu0 0.0
        %1836 = vmatprep.subr.mxu0 0.0
        %1837 = vmatpush1.msra.mxu0 0.0
        %1838 = vmatprep.subr.mxu0 0.0
        %1839 = vmatpush1.msra.mxu0 0.0
        %1840 = vmatprep.subr.mxu0 0.0
        %1841 = vmatpush1.msra.mxu0 0.0
        %1842 = vmatprep.subr.mxu0 0.0
        %1843 = vmatpush1.msra.mxu0 0.0
        %1844 = vmatprep.subr.mxu0 0.0
        %1845 = vmatpush1.msra.mxu0 0.0
        %1846 = vmatprep.subr.mxu0 0.0
        %1847 = vmatpush1.msra.mxu0 0.0
        %1848 = vmatprep.subr.mxu0 0.0
        %1849 = vmatpush1.msra.mxu0 0.0
        %1850 = vmatprep.subr.mxu0 0.0
        %1851 = vmatpush1.msra.mxu0 0.0
        %1852 = vmatprep.subr.mxu0 0.0
        %1853 = vmatpush1.msra.mxu0 0.0
        %1854 = vmatprep.subr.mxu0 0.0
        %1855 = vmatpush1.msra.mxu0 0.0
        %1856 = vmatprep.subr.mxu0 0.0
        %1857 = vmatpush1.msra.mxu0 0.0
        %1858 = vmatprep.subr.mxu0 %v1822
        %1859 = vmatpush1.msra.mxu0 %v1821
        %1860 = vmatprep.subr.mxu0 0.0
        %1861 = vmatpush2.msra.mxu0 0.0
        %1862 = vmatprep.subr.mxu0 0.0
        %1863 = vmatpush2.msra.mxu0 0.0
        %1864 = vmatprep.subr.mxu0 0.0
        %1865 = vmatpush2.msra.mxu0 0.0
        %1866 = vmatprep.subr.mxu0 0.0
        %1867 = vmatpush2.msra.mxu0 0.0
        %1868 = vmatprep.subr.mxu0 0.0
        %1869 = vmatpush2.msra.mxu0 0.0
        %1870 = vmatprep.subr.mxu0 0.0
        %1871 = vmatpush2.msra.mxu0 0.0
        %1872 = vmatprep.subr.mxu0 0.0
        %1873 = vmatpush2.msra.mxu0 0.0
        %1874 = vmatprep.subr.mxu0 0.0
        %1875 = vmatpush2.msra.mxu0 0.0
        %1876 = vmatprep.subr.mxu0 0.0
        %1877 = vmatpush2.msra.mxu0 0.0
        %1878 = vmatprep.subr.mxu0 0.0
        %1879 = vmatpush2.msra.mxu0 0.0
        %1880 = vmatprep.subr.mxu0 0.0
        %1881 = vmatpush2.msra.mxu0 0.0
        %1882 = vmatprep.subr.mxu0 0.0
        %1883 = vmatpush2.msra.mxu0 0.0
        %1884 = vmatprep.subr.mxu0 0.0
        %1885 = vmatpush2.msra.mxu0 0.0
        %1886 = vmatprep.subr.mxu0 0.0
        %1887 = vmatpush2.msra.mxu0 0.0
        %1888 = vmatprep.subr.mxu0 0.0
        %1889 = vmatpush2.msra.mxu0 0.0
        %1890 = vmatprep.subr.mxu0 0.0
        %1891 = vmatpush2.msra.mxu0 0.0
        %1892 = vmatprep.mubr.f32.mxu0 0.0
        %1893 = vmatmul.mubr.f32.gmra.mxu0 %v1826
        %v1894 = vpop.f32.mrf.mxu0
        %v1895 = vadd.f32 0.0, %v1894
        %v1896 = vpop.f32.mrf.mxu0
        %v1897 = vadd.f32 0.0, %v1896
        %1898 = vdwg.mxu0
        %v1899 = vadd.f32 %v1811, %v1895
        %v1900 = vadd.f32 %v1812, %v1897
        %v1901 = vmul.f32 %v1180, %v1032
        %v1902 = vmul.f32 %v1181, %v1036
        %v1903 = vmul.f32 %v1185, %v1034
        %s1904 = scalar_lea.vmem %s3, 64
        %v1905 = vld [vmem:[%s1904] sm:$0xff]
        %1909 = vrot.lane.b32.xlu0 %v1901, 94
        %v1910 = vpop.permute.xlu0 %1909
        %1911 = vrot.lane.b32.xlu0 %v1902, 94
        %v1912 = vpop.permute.xlu0 %1911
        %1913 = vrot.lane.b32.xlu0 %v1903, 94
        %v1914 = vpop.permute.xlu0 %1913
        %v1915 = vsel %vm1054, %v1910, %v1912
        %v1916 = vsel %vm1054, %v1912, %v1914
        %v1920 = vsel %vm284, %v1905, 0
        %1922 = vmatprep.subr.mxu0 0.0
        %1923 = vmatpush1.msra.mxu0 0.0
        %1924 = vmatprep.subr.mxu0 0.0
        %1925 = vmatpush1.msra.mxu0 0.0
        %1926 = vmatprep.subr.mxu0 0.0
        %1927 = vmatpush1.msra.mxu0 0.0
        %1928 = vmatprep.subr.mxu0 0.0
        %1929 = vmatpush1.msra.mxu0 0.0
        %1930 = vmatprep.subr.mxu0 0.0
        %1931 = vmatpush1.msra.mxu0 0.0
        %1932 = vmatprep.subr.mxu0 0.0
        %1933 = vmatpush1.msra.mxu0 0.0
        %1934 = vmatprep.subr.mxu0 0.0
        %1935 = vmatpush1.msra.mxu0 0.0
        %1936 = vmatprep.subr.mxu0 0.0
        %1937 = vmatpush1.msra.mxu0 0.0
        %1938 = vmatprep.subr.mxu0 0.0
        %1939 = vmatpush1.msra.mxu0 0.0
        %1940 = vmatprep.subr.mxu0 0.0
        %1941 = vmatpush1.msra.mxu0 0.0
        %1942 = vmatprep.subr.mxu0 0.0
        %1943 = vmatpush1.msra.mxu0 0.0
        %1944 = vmatprep.subr.mxu0 0.0
        %1945 = vmatpush1.msra.mxu0 0.0
        %1946 = vmatprep.subr.mxu0 0.0
        %1947 = vmatpush1.msra.mxu0 0.0
        %1948 = vmatprep.subr.mxu0 0.0
        %1949 = vmatpush1.msra.mxu0 0.0
        %1950 = vmatprep.subr.mxu0 0.0
        %1951 = vmatpush1.msra.mxu0 0.0
        %1952 = vmatprep.subr.mxu0 %v1916
        %1953 = vmatpush1.msra.mxu0 %v1915
        %1954 = vmatprep.subr.mxu0 0.0
        %1955 = vmatpush2.msra.mxu0 0.0
        %1956 = vmatprep.subr.mxu0 0.0
        %1957 = vmatpush2.msra.mxu0 0.0
        %1958 = vmatprep.subr.mxu0 0.0
        %1959 = vmatpush2.msra.mxu0 0.0
        %1960 = vmatprep.subr.mxu0 0.0
        %1961 = vmatpush2.msra.mxu0 0.0
        %1962 = vmatprep.subr.mxu0 0.0
        %1963 = vmatpush2.msra.mxu0 0.0
        %1964 = vmatprep.subr.mxu0 0.0
        %1965 = vmatpush2.msra.mxu0 0.0
        %1966 = vmatprep.subr.mxu0 0.0
        %1967 = vmatpush2.msra.mxu0 0.0
        %1968 = vmatprep.subr.mxu0 0.0
        %1969 = vmatpush2.msra.mxu0 0.0
        %1970 = vmatprep.subr.mxu0 0.0
        %1971 = vmatpush2.msra.mxu0 0.0
        %1972 = vmatprep.subr.mxu0 0.0
        %1973 = vmatpush2.msra.mxu0 0.0
        %1974 = vmatprep.subr.mxu0 0.0
        %1975 = vmatpush2.msra.mxu0 0.0
        %1976 = vmatprep.subr.mxu0 0.0
        %1977 = vmatpush2.msra.mxu0 0.0
        %1978 = vmatprep.subr.mxu0 0.0
        %1979 = vmatpush2.msra.mxu0 0.0
        %1980 = vmatprep.subr.mxu0 0.0
        %1981 = vmatpush2.msra.mxu0 0.0
        %1982 = vmatprep.subr.mxu0 0.0
        %1983 = vmatpush2.msra.mxu0 0.0
        %1984 = vmatprep.subr.mxu0 0.0
        %1985 = vmatpush2.msra.mxu0 0.0
        %1986 = vmatprep.mubr.f32.mxu0 0.0
        %1987 = vmatmul.mubr.f32.gmra.mxu0 %v1920
        %v1988 = vpop.f32.mrf.mxu0
        %v1989 = vadd.f32 0.0, %v1988
        %v1990 = vpop.f32.mrf.mxu0
        %v1991 = vadd.f32 0.0, %v1990
        %1992 = vdwg.mxu0
        %v1993 = vadd.f32 %v1899, %v1989
        %v1994 = vadd.f32 %v1900, %v1991
        %v1995 = vld [vmem:[%s4] sm:$0xff]
        %1997 = vset.pattern.permute.xlu0 0
        %1998 = vperm.xlu0 %1997, %v1995
        %v1999 = vpop.permute.xlu0 %1998
        %v2001 = vadd.f32 %v1993, %v1999
        %v2002 = vadd.f32 %v1994, %v1999
        %v2003 = vadd.f32 %v2001, %v2002
        %2004 = vadd.xlane.f32.xlu0 %v2003
        %v2005 = vpop.xlane.xlu0 %2004
        %v2006 = vmul.f32 %v2005, %v1146
        %v2007 = vsub.f32 %v2001, %v2006
        %v2008 = vsub.f32 %v2002, %v2006
        %v2009 = vmul.f32 %v2007, %v2007
        %v2010 = vmul.f32 %v2008, %v2008
        %v2011 = vadd.f32 %v2009, %v2010
        %2012 = vadd.xlane.f32.xlu0 %v2011
        %v2013 = vpop.xlane.xlu0 %2012
        %v2014 = vmul.f32 %v2013, %v1146
        %v2015 = vadd.f32 %v2014, 1e-05
        %v2016 = vrsqrt.pop %v2015
        %v2017 = vmul.f32 %v2007, %v2016
        %v2018 = vmul.f32 %v2008, %v2016
        %v2019 = vld [vmem:[%s222] sm:$0xff]
        %v2020 = vld [vmem:[%s222 + $0x8] sm:$0xff]
        %v2021 = vld [vmem:[%s222 + $0x10] sm:$0xff]
        %2025 = vrot.lane.b32.xlu0 %v2019, 111
        %v2026 = vpop.permute.xlu0 %2025
        %2027 = vrot.lane.b32.xlu0 %v2020, 111
        %v2028 = vpop.permute.xlu0 %2027
        %2029 = vrot.lane.b32.xlu0 %v2021, 111
        %v2030 = vpop.permute.xlu0 %2029
        %v2031 = vsel %vm653, %v2026, %v2028
        %v2032 = vsel %vm653, %v2028, %v2030
        %v2035 = vadd.f32 %v2017, %v2031
        %v2036 = vadd.f32 %v2018, %v2032
        %2037 = vst [vmem:[%s217] sm:$0xff] %v2035
        %2038 = vst [vmem:[%s217 + $0x8] sm:$0xff] %v2036
        %s2039 = sand.u32 %s137, 1
        %s2040 = scalar_lea.sflag [#allocation4], %s2039
        %s2041 = sand.u32 %s137, 1
        %s2042 = smul.addr %s2041, 16
        %s2043 = scalar_lea.vmem [#allocation3], %s2042
        // Predicated region
        $region41: #{tpu_custom_call.1} parent=39 // pred_check
          %p2044 = pneg %p147
        $region42: #{tpu_custom_call.1} parent=39 // pred_check_branch
          %2046 = sbr.rel (%p2044) target = $region44
        $region43: #{tpu_custom_call.1} parent=39 // pred_region
          %s2048 = ssub.s32 256, 256
          %2049 = vsyncadd %s2040, %s2048
          %s2050 = smul.addr %s19, 2
          %s2051 = smul.addr %s2050, 128
          %s2052 = scalar_lea.hbm %s5, %s2051
          %s2054 = sshll.u32 %s2043, 4
          %s2055 = int_to_ptr.vmem [resolvable:$true] %s2054
          %2057 = dma.vmem_to_hbm [thread:$0]  %s2055, 256, %s2052, %s2040
        $region44: #{tpu_custom_call.1} parent=39 // pred_fallthru
          _
      $region40: #{tpu_custom_call.1} parent=5 // pred_fallthru
        _
      %p2058 = scmp.le.s32.totalorder 2, %s14
      // Predicated region
      $region45: #{tpu_custom_call.1} parent=5 // pred_check
        %p2059 = pneg %p2058
      $region46: #{tpu_custom_call.1} parent=5 // pred_check_branch
        %2061 = sbr.rel (%p2059) target = $region48
      $region47: #{tpu_custom_call.1} parent=5 // pred_region
        %s2062 = ssub.s32 %s14, 2
        // Predicated region
        $region49: #{tpu_custom_call.1} parent=47 // pred_check
          %p2063 = pneg %p153
        $region50: #{tpu_custom_call.1} parent=47 // pred_check_branch
          %2065 = sbr.rel (%p2063) target = $region52
        $region51: #{tpu_custom_call.1} parent=47 // pred_region
          %s2066 = sand.u32 %s138, 1
          %s2067 = scalar_lea.sflag [#allocation4], %s2066
          %s2068 = sand.u32 %s138, 1
          %s2069 = smul.addr %s2068, 16
          %s2070 = scalar_lea.vmem [#allocation3], %s2069
          %2071 = dma.done %s2067, 256
        $region52: #{tpu_custom_call.1} parent=47 // pred_fallthru
          _
      $region48: #{tpu_custom_call.1} parent=5 // pred_fallthru
        _
    $region6: #{tpu_custom_call.1} parent=1 // loop_footer
      %s18 = sadd.s32 1, %s14
    $region7: #{tpu_custom_call.1} parent=1 // loop_footer_branch
      %13 = sbr.rel target = $region3
    $region8: #{tpu_custom_call.1} parent=1 // loop_exit
      _
    %2072 = vsyncpa [#allocation4], 1
    %s2073 = scalar_lea.sflag [#allocation4], 1
    %2074 = vsyncpa %s2073, 1

</llo_original>
